<compile_context>
chip_gen: v6e
topology: v6e:2x2x1
jax: 0.10.0
libtpu: 0.0.40
codegen_flags: <defaults>
</compile_context>

<pallas_src>
import functools

import numpy as np
import jax
import jax.numpy as jnp
from jax.experimental import pallas as pl
from jax.experimental.pallas import tpu as pltpu


def _sae_kernel(x_ref, b_dec_ref, w_enc_ref, b_enc_ref, w_dec_ref,
                x_rec_ref, acts_ref, l2_ref, l1_ref,
                *scratch, compute_dtype, acc_direct, cast_x):
    h = pl.program_id(1)
    n_h = pl.num_programs(1)

    idx = 0
    l1_acc = scratch[idx]; idx += 1
    rec_acc = None
    if not acc_direct:
        rec_acc = scratch[idx]; idx += 1
    xc_ref = None
    if cast_x:
        xc_ref = scratch[idx]; idx += 1

    # f32 outputs: accumulate decoder sums directly into the resident output
    # block; otherwise use the f32 scratch accumulator.
    acc_ref = x_rec_ref if acc_direct else rec_acc

    @pl.when(h == 0)
    def _init():
        acc_ref[...] = jnp.zeros_like(acc_ref)
        l1_acc[...] = jnp.zeros_like(l1_acc)
        if cast_x:
            # Cast the resident x block once per batch tile (not per h step).
            xc_ref[...] = x_ref[...].astype(compute_dtype)

    x_mm = xc_ref[...] if cast_x else x_ref[...]            # (tb, d_mlp) compute dtype

    # Encoder for this hidden tile. b_dec already folded into b_enc.
    pre = jnp.dot(x_mm, w_enc_ref[...],
                  preferred_element_type=jnp.float32) + b_enc_ref[...]
    acts = jnp.maximum(pre, 0.0)                            # (tb, th) f32
    acts_ref[...] = acts.astype(acts_ref.dtype)

    # Decoder partial sum (reduction over hidden tiles), f32 accumulation.
    acc_ref[...] += jnp.dot(acts.astype(compute_dtype), w_dec_ref[...],
                            preferred_element_type=jnp.float32)

    # Lane-shaped L1 partial; acts is post-ReLU so no abs needed.
    l1_acc[...] += jnp.sum(acts, axis=0, keepdims=True)

    @pl.when(h == n_h - 1)
    def _finish():
        rec = acc_ref[...].astype(jnp.float32) + b_dec_ref[...]   # (tb, d_mlp) f32
        x_rec_ref[...] = rec.astype(x_rec_ref.dtype)

        diff = rec - x_ref[...].astype(jnp.float32)
        l2_part = jnp.sum(diff * diff)          # per-batch-tile partial
        l1_part = jnp.sum(l1_acc[...])          # per-batch-tile partial

        row = jax.lax.broadcasted_iota(jnp.int32, (8, 128), 0)
        col = jax.lax.broadcasted_iota(jnp.int32, (8, 128), 1)
        one_hot = (row == 0) & (col == 0)
        l2_ref[...] = jnp.where(one_hot, l2_part, 0.0)
        l1_ref[...] = jnp.where(one_hot, l1_part, 0.0)


def _vmem_budget_bytes(headroom=12 * 2 ** 20):
    """Per-generation VMEM budget: physical capacity minus headroom.

    128 MiB parts (v5e/v6e) get ~116 MiB; v7x (64 MiB/TC) gets ~52 MiB. Falls
    back to a conservative 64 MiB capacity if the query is unavailable.
    """
    cap = 64 * 2 ** 20
    try:
        info = pltpu.get_tpu_info()
        cap = int(getattr(info, "vmem_capacity_bytes", cap))
    except Exception:
        pass
    return max(cap - headroom, 32 * 2 ** 20)


def _vmem_estimate(tile_b, tile_h, d_mlp, c_sz, x_sz, o_sz, a_sz,
                   acc_direct, cast_x, wbuf):
    """Double-buffered working-set estimate in bytes."""
    return (wbuf * (d_mlp * tile_h * c_sz            # W_enc tile(s)
                    + tile_h * d_mlp * c_sz)         # W_dec tile(s)
            + 2 * tile_h * 4                         # folded b_enc tile
            + 2 * tile_b * tile_h * a_sz             # acts output tile
            + 2 * tile_b * d_mlp * x_sz              # x block
            + 2 * tile_b * d_mlp * o_sz              # x_rec block
            + 2 * 2 * 8 * 128 * 4                    # loss partial blocks
            + 2 * d_mlp * 4                          # b_dec
            + tile_h * 4                             # L1 scratch
            + (0 if acc_direct else tile_b * d_mlp * 4)     # f32 recon scratch
            + (tile_b * d_mlp * c_sz if cast_x else 0))     # cast-x scratch


def sae_forward(x, W_enc, W_dec, b_enc, b_dec, *, l1_coeff=3e-4,
                compute_dtype=jnp.bfloat16, acts_dtype=None,
                tile_b=None, tile_h=None, weight_buffers=2, max_tile_b=1024):
    B, d_mlp = x.shape
    d_hidden = W_enc.shape[1]

    out_dtype = x.dtype
    acts_dtype = out_dtype if acts_dtype is None else jnp.dtype(acts_dtype)
    acc_direct = (jnp.dtype(out_dtype) == jnp.dtype(jnp.float32))
    cast_x = (jnp.dtype(x.dtype) != jnp.dtype(compute_dtype))

    sz = lambda dt: jnp.dtype(dt).itemsize
    c_sz, x_sz, o_sz, a_sz = (sz(compute_dtype), sz(x.dtype),
                              sz(out_dtype), sz(acts_dtype))

    budget = _vmem_budget_bytes()

    # Hidden tile: largest of {512, 256, 128} dividing d_hidden (both fill the
    # 256-wide MXU; 512 halves the grid-step count / per-step overhead).
    if tile_h is None:
        for th in (512, 256, 128):
            if d_hidden % th == 0:
                tile_h = th
                break
        else:
            tile_h = d_hidden
    tile_h = min(tile_h, d_hidden)
    assert d_hidden % tile_h == 0, "d_hidden must be divisible by tile_h"

    # Batch tile: primary knob. Bigger tile_b => fewer weight re-streams from
    # HBM. Pick the largest divisor of B (<= max_tile_b) fitting the budget.
    if tile_b is None:
        cands = [t for t in range(min(B, max_tile_b), 0, -1) if B % t == 0]
        tile_b = cands[-1]
        for t in cands:
            if _vmem_estimate(t, tile_h, d_mlp, c_sz, x_sz, o_sz, a_sz,
                              acc_direct, cast_x, weight_buffers) <= budget:
                tile_b = t
                break
    assert B % tile_b == 0, "batch must be divisible by tile_b"

    n_b, n_h = B // tile_b, d_hidden // tile_h

    est = _vmem_estimate(tile_b, tile_h, d_mlp, c_sz, x_sz, o_sz, a_sz,
                         acc_direct, cast_x, weight_buffers)
    assert est <= budget, (
        f"SAE working set {est / 2**20:.1f} MiB exceeds VMEM budget "
        f"{budget / 2**20:.1f} MiB; lower tile_b/tile_h/weight_buffers")
    vmem_limit = int(min(max(1.2 * est, 32 * 2 ** 20), budget))

    # Cast streamed weights to the compute dtype (halves weight HBM traffic for
    # bf16). Accumulation stays f32 inside the kernel.
    W_enc_c = W_enc.astype(compute_dtype)
    W_dec_c = W_dec.astype(compute_dtype)

    # Fold the decoder bias into the encoder bias (exact in real arithmetic):
    #   relu((x - b_dec) @ W_enc + b_enc) == relu(x @ W_enc + (b_enc - b_dec @ W_enc))
    b_enc_fold = (b_enc.astype(jnp.float32)
                  - jnp.dot(b_dec.astype(jnp.float32),
                            W_enc.astype(jnp.float32))).reshape(1, d_hidden)
    b_dec2 = b_dec.astype(jnp.float32).reshape(1, d_mlp)

    kernel = functools.partial(_sae_kernel, compute_dtype=compute_dtype,
                               acc_direct=acc_direct, cast_x=cast_x)

    out_shapes = (
        jax.ShapeDtypeStruct((B, d_mlp), out_dtype),         # x_reconstruct
        jax.ShapeDtypeStruct((B, d_hidden), acts_dtype),     # acts
        jax.ShapeDtypeStruct((8 * n_b, 128), jnp.float32),   # l2 partials
        jax.ShapeDtypeStruct((8 * n_b, 128), jnp.float32),   # l1 partials
    )

    scratch_shapes = [pltpu.VMEM((1, tile_h), jnp.float32)]  # L1 accumulator
    if not acc_direct:
        scratch_shapes.append(pltpu.VMEM((tile_b, d_mlp), jnp.float32))
    if cast_x:
        scratch_shapes.append(pltpu.VMEM((tile_b, d_mlp), compute_dtype))

    w_kwargs = {}
    if weight_buffers > 2:
        w_kwargs = dict(pipeline_mode=pl.Buffered(weight_buffers))

    grid_spec = pltpu.PrefetchScalarGridSpec(
        num_scalar_prefetch=0,
        grid=(n_b, n_h),
        in_specs=[
            pl.BlockSpec((tile_b, d_mlp), lambda b, h: (b, 0)),            # x (resident)
            pl.BlockSpec((1, d_mlp), lambda b, h: (0, 0)),                 # b_dec (f32)
            pl.BlockSpec((d_mlp, tile_h), lambda b, h: (0, h), **w_kwargs),  # W_enc tile
            pl.BlockSpec((1, tile_h), lambda b, h: (0, h)),                # folded b_enc
            pl.BlockSpec((tile_h, d_mlp), lambda b, h: (h, 0), **w_kwargs),  # W_dec tile
        ],
        out_specs=[
            pl.BlockSpec((tile_b, d_mlp), lambda b, h: (b, 0)),   # x_rec (accumulated)
            pl.BlockSpec((tile_b, tile_h), lambda b, h: (b, h)),  # acts (lane-dense)
            pl.BlockSpec((8, 128), lambda b, h: (b, 0)),          # l2 partial block
            pl.BlockSpec((8, 128), lambda b, h: (b, 0)),          # l1 partial block
        ],
        scratch_shapes=scratch_shapes,
    )

    x_rec, acts, l2_parts, l1_parts = pl.pallas_call(
        kernel,
        out_shape=out_shapes,
        grid_spec=grid_spec,
        compiler_params=pltpu.CompilerParams(
            dimension_semantics=("parallel", "arbitrary"),
            vmem_limit_bytes=vmem_limit),
    )(x, b_dec2, W_enc_c, b_enc_fold, W_dec_c)

    # Tiny final reductions over the per-batch-tile partials.
    l2_loss = jnp.sum(l2_parts) / B               # sum(-1).mean(0)
    l1_loss = l1_coeff * jnp.sum(l1_parts)
    loss = l2_loss + l1_loss
    return loss, x_rec, acts, l2_loss, l1_loss


def _reference(x, W_enc, W_dec, b_enc, b_dec, l1_coeff):
    x_cent = x - b_dec
    acts = jax.nn.relu(x_cent @ W_enc + b_enc)
    x_rec = acts @ W_dec + b_dec
    l2 = jnp.mean(jnp.sum((x_rec.astype(jnp.float32) - x.astype(jnp.float32)) ** 2,
                          axis=-1))
    l1 = l1_coeff * jnp.sum(jnp.abs(acts.astype(jnp.float32)))
    return l2 + l1, x_rec, acts, l2, l1


if __name__ == "__main__":
    # Small but multi-tile config: d_mlp=256, dict_mult=4 -> d_hidden=1024.
    B, d_mlp, dict_mult = 64, 256, 4
    d_hidden = d_mlp * dict_mult
    l1_coeff = 3e-4

    key = jax.random.PRNGKey(0)
    k_x, k_we, k_wd, k_be, k_bd = jax.random.split(key, 5)

    # Deterministic kaiming-uniform-ish init (bound = sqrt(6/fan_in)).
    bound_enc = (6.0 / d_mlp) ** 0.5
    bound_dec = (6.0 / d_hidden) ** 0.5
    W_enc = jax.random.uniform(k_we, (d_mlp, d_hidden), jnp.float32,
                               -bound_enc, bound_enc)
    W_dec = jax.random.uniform(k_wd, (d_hidden, d_mlp), jnp.float32,
                               -bound_dec, bound_dec)
    W_dec = W_dec / jnp.linalg.norm(W_dec, axis=-1, keepdims=True)
    # Small nonzero biases so the bias-fold path is actually exercised.
    b_enc = 0.05 * jax.random.normal(k_be, (d_hidden,), jnp.float32)
    b_dec = 0.05 * jax.random.normal(k_bd, (d_mlp,), jnp.float32)
    x = jax.random.normal(k_x, (B, d_mlp), jnp.float32)

    r_loss, r_xrec, r_acts, r_l2, r_l1 = _reference(x, W_enc, W_dec, b_enc,
                                                    b_dec, l1_coeff)

    # 1) f32 debug path, explicit multi-tile grid (2 batch x 4 hidden tiles);
    #    accumulates directly into the x_reconstruct output block.
    loss, x_rec, acts, l2, l1 = jax.block_until_ready(
        sae_forward(x, W_enc, W_dec, b_enc, b_dec, l1_coeff=l1_coeff,
                    compute_dtype=jnp.float32, tile_b=32, tile_h=256))
    assert jnp.allclose(x_rec, r_xrec, atol=2e-4, rtol=2e-4)
    assert jnp.allclose(acts, r_acts, atol=2e-4, rtol=2e-4)
    assert jnp.allclose(l2, r_l2, atol=2e-3, rtol=2e-3)
    assert jnp.allclose(l1, r_l1, atol=2e-3, rtol=2e-3)
    assert jnp.allclose(loss, r_loss, atol=2e-3, rtol=2e-3)

    # 2) Default perf path: f32 x, bf16 weights/operands, bf16 acts output,
    #    auto-picked tiles (tile_b=64, tile_h=512), cast-x scratch exercised.
    lb, xrb, actb, l2b, l1b = jax.block_until_ready(
        sae_forward(x, W_enc, W_dec, b_enc, b_dec, l1_coeff=l1_coeff,
                    acts_dtype=jnp.bfloat16))
    assert jnp.allclose(xrb.astype(jnp.float32), r_xrec, atol=6e-2, rtol=6e-2)
    assert jnp.allclose(actb.astype(jnp.float32), r_acts, atol=6e-2, rtol=6e-2)
    assert jnp.allclose(l2b, r_l2, rtol=8e-2, atol=2e-2)
    assert jnp.allclose(l1b, r_l1, rtol=8e-2, atol=2e-2)
    assert jnp.allclose(lb, r_loss, rtol=8e-2, atol=2e-2)

    # 3) bf16 end-to-end (bf16 x / outputs, f32 scratch accumulator path).
    xb = x.astype(jnp.bfloat16)
    lc, xrc, actc, l2c, l1c = jax.block_until_ready(
        sae_forward(xb, W_enc, W_dec, b_enc, b_dec, l1_coeff=l1_coeff))
    assert jnp.allclose(xrc.astype(jnp.float32), r_xrec, atol=8e-2, rtol=8e-2)
    assert jnp.allclose(actc.astype(jnp.float32), r_acts, atol=8e-2, rtol=8e-2)
    assert jnp.allclose(l2c, r_l2, rtol=8e-2, atol=2e-2)
    assert jnp.allclose(l1c, r_l1, rtol=8e-2, atol=2e-2)
    assert jnp.allclose(lc, r_loss, rtol=8e-2, atol=2e-2)

    print("KERNEL_OK")
</pallas_src>

<mosaic_0001>
module attributes {stable_mosaic.version = 11 : i64} {
  func.func @_sae_kernel(%arg0: i32, %arg1: i32, %arg2: memref<32x256xf32, #tpu.memory_space<vmem>>, %arg3: memref<1x256xf32, #tpu.memory_space<vmem>>, %arg4: memref<256x256xf32, #tpu.memory_space<vmem>>, %arg5: memref<1x256xf32, #tpu.memory_space<vmem>>, %arg6: memref<256x256xf32, #tpu.memory_space<vmem>>, %arg7: memref<32x256xf32, #tpu.memory_space<vmem>>, %arg8: memref<32x256xf32, #tpu.memory_space<vmem>>, %arg9: memref<8x128xf32, #tpu.memory_space<vmem>>, %arg10: memref<8x128xf32, #tpu.memory_space<vmem>>, %arg11: memref<1x256xf32, #tpu.memory_space<vmem>>) attributes {dimension_semantics = [#tpu.dimension_semantics<parallel>, #tpu.dimension_semantics<arbitrary>], iteration_bounds = array<i64: 2, 4>, scalar_prefetch = 0 : i64, scratch_operands = 1 : i64, tpu.core_type = #tpu.core_type<tc>, window_params = [{transform_indices = @transform_0, window_bounds = array<i64: 32, 256>}, {pipeline_mode = #tpu.pipeline_mode<synchronous>, transform_indices = @transform_1, window_bounds = array<i64: 1, 256>}, {transform_indices = @transform_2, window_bounds = array<i64: 256, 256>}, {transform_indices = @transform_3, window_bounds = array<i64: 1, 256>}, {transform_indices = @transform_4, window_bounds = array<i64: 256, 256>}, {transform_indices = @transform_5, window_bounds = array<i64: 32, 256>}, {transform_indices = @transform_6, window_bounds = array<i64: 32, 256>}, {transform_indices = @transform_7, window_bounds = array<i64: 8, 128>}, {transform_indices = @transform_8, window_bounds = array<i64: 8, 128>}]} {
    %c0_i32 = arith.constant 0 : i32
    %0 = arith.cmpi eq, %arg1, %c0_i32 : i32
    %1 = arith.extui %0 : i1 to i32
    %c0_i32_0 = arith.constant 0 : i32
    %2 = arith.cmpi ne, %1, %c0_i32_0 : i32
    scf.if %2 {
      %cst_22 = arith.constant 0.000000e+00 : f32
      %25 = vector.broadcast %cst_22 : f32 to vector<32x256xf32>
      %c0_23 = arith.constant 0 : index
      %c0_24 = arith.constant 0 : index
      %26 = vector.load %arg7[%c0_23, %c0_24] : memref<32x256xf32, #tpu.memory_space<vmem>>, vector<32x256xf32>
      tpu.vector_store %arg7[%c0_23, %c0_24], %25 {strides = array<i32>} : memref<32x256xf32, #tpu.memory_space<vmem>>, vector<32x256xf32>,
      %cst_25 = arith.constant 0.000000e+00 : f32
      %27 = vector.broadcast %cst_25 : f32 to vector<1x256xf32>
      %c0_26 = arith.constant 0 : index
      %c0_27 = arith.constant 0 : index
      %28 = vector.load %arg11[%c0_26, %c0_27] : memref<1x256xf32, #tpu.memory_space<vmem>>, vector<1x256xf32>
      tpu.vector_store %arg11[%c0_26, %c0_27], %27 {strides = array<i32>} : memref<1x256xf32, #tpu.memory_space<vmem>>, vector<1x256xf32>,
    } else {
    }
    %c0 = arith.constant 0 : index
    %c0_1 = arith.constant 0 : index
    %3 = vector.load %arg2[%c0, %c0_1] : memref<32x256xf32, #tpu.memory_space<vmem>>, vector<32x256xf32>
    %c0_2 = arith.constant 0 : index
    %c0_3 = arith.constant 0 : index
    %4 = vector.load %arg4[%c0_2, %c0_3] : memref<256x256xf32, #tpu.memory_space<vmem>>, vector<256x256xf32>
    %cst = arith.constant dense<0.000000e+00> : vector<32x256xf32>
    %5 = tpu.matmul %3, %4, %cst {dimension_numbers = #tpu.dot_dimension_numbers<[1], [0], [0], [1], [0, 0, 1, 1], [], []>} : vector<32x256xf32>, vector<256x256xf32>, vector<32x256xf32> -> vector<32x256xf32>
    %c0_4 = arith.constant 0 : index
    %c0_5 = arith.constant 0 : index
    %6 = vector.load %arg5[%c0_4, %c0_5] : memref<1x256xf32, #tpu.memory_space<vmem>>, vector<1x256xf32>
    %7 = vector.broadcast %6 : vector<1x256xf32> to vector<32x256xf32>
    %8 = arith.addf %5, %7 : vector<32x256xf32>
    %cst_6 = arith.constant 0.000000e+00 : f32
    %9 = vector.broadcast %cst_6 : f32 to vector<32x256xf32>
    %10 = arith.maximumf %8, %9 : vector<32x256xf32>
    %c0_7 = arith.constant 0 : index
    %c0_8 = arith.constant 0 : index
    %11 = vector.load %arg8[%c0_7, %c0_8] : memref<32x256xf32, #tpu.memory_space<vmem>>, vector<32x256xf32>
    tpu.vector_store %arg8[%c0_7, %c0_8], %10 {strides = array<i32>} : memref<32x256xf32, #tpu.memory_space<vmem>>, vector<32x256xf32>,
    %c0_9 = arith.constant 0 : index
    %c0_10 = arith.constant 0 : index
    %12 = vector.load %arg7[%c0_9, %c0_10] : memref<32x256xf32, #tpu.memory_space<vmem>>, vector<32x256xf32>
    %c0_11 = arith.constant 0 : index
    %c0_12 = arith.constant 0 : index
    %13 = vector.load %arg6[%c0_11, %c0_12] : memref<256x256xf32, #tpu.memory_space<vmem>>, vector<256x256xf32>
    %cst_13 = arith.constant dense<0.000000e+00> : vector<32x256xf32>
    %14 = tpu.matmul %10, %13, %cst_13 {dimension_numbers = #tpu.dot_dimension_numbers<[1], [0], [0], [1], [0, 0, 1, 1], [], []>} : vector<32x256xf32>, vector<256x256xf32>, vector<32x256xf32> -> vector<32x256xf32>
    %15 = arith.addf %12, %14 : vector<32x256xf32>
    %c0_14 = arith.constant 0 : index
    %c0_15 = arith.constant 0 : index
    %16 = vector.load %arg7[%c0_14, %c0_15] : memref<32x256xf32, #tpu.memory_space<vmem>>, vector<32x256xf32>
    tpu.vector_store %arg7[%c0_14, %c0_15], %15 {strides = array<i32>} : memref<32x256xf32, #tpu.memory_space<vmem>>, vector<32x256xf32>,
    %c0_16 = arith.constant 0 : index
    %c0_17 = arith.constant 0 : index
    %17 = vector.load %arg11[%c0_16, %c0_17] : memref<1x256xf32, #tpu.memory_space<vmem>>, vector<1x256xf32>
    %cst_18 = arith.constant dense<0.000000e+00> : vector<256xf32>
    %18 = vector.multi_reduction <add>, %10, %cst_18 [0] : vector<32x256xf32> to vector<256xf32>
    %19 = vector.shape_cast %18 : vector<256xf32> to vector<1x256xf32>
    %20 = arith.addf %17, %19 : vector<1x256xf32>
    %c0_19 = arith.constant 0 : index
    %c0_20 = arith.constant 0 : index
    %21 = vector.load %arg11[%c0_19, %c0_20] : memref<1x256xf32, #tpu.memory_space<vmem>>, vector<1x256xf32>
    tpu.vector_store %arg11[%c0_19, %c0_20], %20 {strides = array<i32>} : memref<1x256xf32, #tpu.memory_space<vmem>>, vector<1x256xf32>,
    %c3_i32 = arith.constant 3 : i32
    %22 = arith.cmpi eq, %arg1, %c3_i32 : i32
    %23 = arith.extui %22 : i1 to i32
    %c0_i32_21 = arith.constant 0 : i32
    %24 = arith.cmpi ne, %23, %c0_i32_21 : i32
    scf.if %24 {
      %c0_22 = arith.constant 0 : index
      %c0_23 = arith.constant 0 : index
      %25 = vector.load %arg7[%c0_22, %c0_23] : memref<32x256xf32, #tpu.memory_space<vmem>>, vector<32x256xf32>
      %c0_24 = arith.constant 0 : index
      %c0_25 = arith.constant 0 : index
      %26 = vector.load %arg3[%c0_24, %c0_25] : memref<1x256xf32, #tpu.memory_space<vmem>>, vector<1x256xf32>
      %27 = vector.broadcast %26 : vector<1x256xf32> to vector<32x256xf32>
      %28 = arith.addf %25, %27 : vector<32x256xf32>
      %c0_26 = arith.constant 0 : index
      %c0_27 = arith.constant 0 : index
      %29 = vector.load %arg7[%c0_26, %c0_27] : memref<32x256xf32, #tpu.memory_space<vmem>>, vector<32x256xf32>
      tpu.vector_store %arg7[%c0_26, %c0_27], %28 {strides = array<i32>} : memref<32x256xf32, #tpu.memory_space<vmem>>, vector<32x256xf32>,
      %c0_28 = arith.constant 0 : index
      %c0_29 = arith.constant 0 : index
      %30 = vector.load %arg2[%c0_28, %c0_29] : memref<32x256xf32, #tpu.memory_space<vmem>>, vector<32x256xf32>
      %31 = arith.subf %28, %30 : vector<32x256xf32>
      %32 = arith.mulf %31, %31 : vector<32x256xf32>
      %33 = vector.shape_cast %32 : vector<32x256xf32> to vector<1x32x256xf32>
      %cst_30 = arith.constant dense<0.000000e+00> : vector<1xf32>
      %34 = vector.multi_reduction <add>, %33, %cst_30 [1, 2] : vector<1x32x256xf32> to vector<1xf32>
      %35 = vector.shape_cast %34 : vector<1xf32> to vector<1x1x1xf32>
      %36 = vector.extract %35[0, 0, 0] : f32 from vector<1x1x1xf32>
      %c0_31 = arith.constant 0 : index
      %c0_32 = arith.constant 0 : index
      %37 = vector.load %arg11[%c0_31, %c0_32] : memref<1x256xf32, #tpu.memory_space<vmem>>, vector<1x256xf32>
      %38 = vector.shape_cast %37 : vector<1x256xf32> to vector<1x1x256xf32>
      %cst_33 = arith.constant dense<0.000000e+00> : vector<1xf32>
      %39 = vector.multi_reduction <add>, %38, %cst_33 [1, 2] : vector<1x1x256xf32> to vector<1xf32>
      %40 = vector.shape_cast %39 : vector<1xf32> to vector<1x1x1xf32>
      %41 = vector.extract %40[0, 0, 0] : f32 from vector<1x1x1xf32>
      %42 = tpu.iota {dimensions = array<i32: 0>} : vector<8x128xi32>
      %43 = tpu.iota {dimensions = array<i32: 1>} : vector<8x128xi32>
      %c0_i32_34 = arith.constant 0 : i32
      %44 = vector.broadcast %c0_i32_34 : i32 to vector<8x128xi32>
      %45 = arith.cmpi eq, %42, %44 : vector<8x128xi32>
      %c0_i32_35 = arith.constant 0 : i32
      %46 = vector.broadcast %c0_i32_35 : i32 to vector<8x128xi32>
      %47 = arith.cmpi eq, %43, %46 : vector<8x128xi32>
      %48 = arith.andi %45, %47 : vector<8x128xi1>
      %cst_36 = arith.constant 0.000000e+00 : f32
      %49 = vector.broadcast %36 : f32 to vector<8x128xf32>
      %50 = vector.broadcast %cst_36 : f32 to vector<8x128xf32>
      %51 = arith.select %48, %49, %50 : vector<8x128xi1>, vector<8x128xf32>
      %c0_37 = arith.constant 0 : index
      %c0_38 = arith.constant 0 : index
      %52 = vector.load %arg9[%c0_37, %c0_38] : memref<8x128xf32, #tpu.memory_space<vmem>>, vector<8x128xf32>
      tpu.vector_store %arg9[%c0_37, %c0_38], %51 {strides = array<i32>} : memref<8x128xf32, #tpu.memory_space<vmem>>, vector<8x128xf32>,
      %cst_39 = arith.constant 0.000000e+00 : f32
      %53 = vector.broadcast %41 : f32 to vector<8x128xf32>
      %54 = vector.broadcast %cst_39 : f32 to vector<8x128xf32>
      %55 = arith.select %48, %53, %54 : vector<8x128xi1>, vector<8x128xf32>
      %c0_40 = arith.constant 0 : index
      %c0_41 = arith.constant 0 : index
      %56 = vector.load %arg10[%c0_40, %c0_41] : memref<8x128xf32, #tpu.memory_space<vmem>>, vector<8x128xf32>
      tpu.vector_store %arg10[%c0_40, %c0_41], %55 {strides = array<i32>} : memref<8x128xf32, #tpu.memory_space<vmem>>, vector<8x128xf32>,
    } else {
    }
    return
  }
  func.func @transform_0(%arg0: i32, %arg1: i32) -> (i32, i32) {
    %c0_i32 = arith.constant 0 : i32
    %c0_i32_0 = arith.constant 0 : i32
    return %arg0, %c0_i32 : i32, i32
  }
  func.func @transform_1(%arg0: i32, %arg1: i32) -> (i32, i32) {
    %c0_i32 = arith.constant 0 : i32
    %c0_i32_0 = arith.constant 0 : i32
    %c0_i32_1 = arith.constant 0 : i32
    return %c0_i32, %c0_i32_0 : i32, i32
  }
  func.func @transform_2(%arg0: i32, %arg1: i32) -> (i32, i32) {
    %c0_i32 = arith.constant 0 : i32
    %c0_i32_0 = arith.constant 0 : i32
    return %c0_i32, %arg1 : i32, i32
  }
  func.func @transform_3(%arg0: i32, %arg1: i32) -> (i32, i32) {
    %c0_i32 = arith.constant 0 : i32
    %c0_i32_0 = arith.constant 0 : i32
    return %c0_i32, %arg1 : i32, i32
  }
  func.func @transform_4(%arg0: i32, %arg1: i32) -> (i32, i32) {
    %c0_i32 = arith.constant 0 : i32
    %c0_i32_0 = arith.constant 0 : i32
    return %arg1, %c0_i32 : i32, i32
  }
  func.func @transform_5(%arg0: i32, %arg1: i32) -> (i32, i32) {
    %c0_i32 = arith.constant 0 : i32
    %c0_i32_0 = arith.constant 0 : i32
    return %arg0, %c0_i32 : i32, i32
  }
  func.func @transform_6(%arg0: i32, %arg1: i32) -> (i32, i32) {
    %c0_i32 = arith.constant 0 : i32
    return %arg0, %arg1 : i32, i32
  }
  func.func @transform_7(%arg0: i32, %arg1: i32) -> (i32, i32) {
    %c0_i32 = arith.constant 0 : i32
    %c0_i32_0 = arith.constant 0 : i32
    return %arg0, %c0_i32 : i32, i32
  }
  func.func @transform_8(%arg0: i32, %arg1: i32) -> (i32, i32) {
    %c0_i32 = arith.constant 0 : i32
    %c0_i32_0 = arith.constant 0 : i32
    return %arg0, %c0_i32 : i32, i32
  }
}

</mosaic_0001>

<llo_original>
// kernel: tpu_custom_call.1
$region0: #{tpu_custom_call.1}
  #allocation0 [shape = 'u32[]', space=smem, size = 0x4, offset = 0x4, fixed_abs, tag = 'smem constant byte address 0x4 - core index']
  #allocation1 [shape = 'u32[144,128]{1,0:T(1,128)}', space=vmem, size = 0x12000, scoped, tag = 'internal scratch']
  #allocation2 [shape = 'f32[1,256]{1,0:T(1,128)}', space=vmem, size = 0x400, scoped, tag = 'scratch operand']
  %s0 = inlined_call_operand.hbm [shape: f32[64,256], index: 0, kind: input, shape index: {}]
  %s1 = inlined_call_operand.hbm [shape: f32[1,256], index: 1, kind: input, shape index: {}]
  %s2 = inlined_call_operand.hbm [shape: f32[256,1024], index: 2, kind: input, shape index: {}]
  %s3 = inlined_call_operand.hbm [shape: f32[1,1024], index: 3, kind: input, shape index: {}]
  %s4 = inlined_call_operand.hbm [shape: f32[1024,256], index: 4, kind: input, shape index: {}]
  %s5 = inlined_call_operand.hbm [shape: f32[64,256], index: 5, kind: output, shape index: {0}]
  %s6 = inlined_call_operand.hbm [shape: f32[64,1024], index: 6, kind: output, shape index: {1}]
  %s7 = inlined_call_operand.hbm [shape: f32[16,128], index: 7, kind: output, shape index: {2}]
  %s8 = inlined_call_operand.hbm [shape: f32[16,128], index: 8, kind: output, shape index: {3}]
  %9 = xla_tuple %s5, %s6, %s7, %s8
  %s10 = sld [smem:[#allocation0]]
  $region105: #{tpu_custom_call.1} parent=0
    _
  %s12 = ssub.s32 1, %s10
  %s13 = scalar_select 0, %s12, %s10
  $region1: #{tpu_custom_call.1} parent=0
    #allocation3 [shape = 'u8[65536]{0}', space=vmem, size = 0x10000, scoped, tag = 'input window, operand 0']
    #allocation4 [shape = 's32[2]{0}', space=sflag, size = 0x8, scoped, tag = 'scoped memory for tpu_custom_call.1']
    #allocation5 [shape = 's32[2]{0}', space=sflag, size = 0x8, scoped, tag = 'scoped memory for tpu_custom_call.1']
    #allocation6 [shape = 'u8[1024]{0}', space=vmem, size = 0x400, scoped, tag = 'input window, operand 1, single buffered']
    #allocation7 [shape = 's32[1]{0}', space=sflag, size = 0x4, scoped, tag = 'scoped memory for tpu_custom_call.1']
    #allocation8 [shape = 'u8[524288]{0}', space=vmem, size = 0x80000, scoped, tag = 'input window, operand 2']
    #allocation9 [shape = 'u8[2048]{0}', space=vmem, size = 0x800, scoped, tag = 'input window, operand 3']
    #allocation10 [shape = 'u8[524288]{0}', space=vmem, size = 0x80000, scoped, tag = 'input window, operand 4']
    #allocation11 [shape = 'u8[65536]{0}', space=vmem, size = 0x10000, scoped, tag = 'output window, operand 0']
    #allocation12 [shape = 'u8[65536]{0}', space=vmem, size = 0x10000, scoped, tag = 'output window, operand 1']
    #allocation13 [shape = 's32[2]{0}', space=sflag, size = 0x8, scoped, tag = 'scoped memory for tpu_custom_call.1']
    #allocation14 [shape = 'u8[8192]{0}', space=vmem, size = 0x2000, scoped, tag = 'output window, operand 2']
    #allocation15 [shape = 'u8[8192]{0}', space=vmem, size = 0x2000, scoped, tag = 'output window, operand 3']
    #allocation16 [shape = 's32[2]{0}', space=sflag, size = 0x8, scoped, tag = 'scoped memory for tpu_custom_call.1']
    %14 = vsyncpa [#allocation4], 0
    %s15 = scalar_lea.sflag [#allocation4], 1
    %16 = vsyncpa %s15, 0
    %17 = vsyncpa [#allocation7], 0
    %18 = vsyncpa [#allocation5], 0
    %s19 = scalar_lea.sflag [#allocation5], 1
    %20 = vsyncpa %s19, 0
    %21 = vsyncpa [#allocation13], 0
    %s22 = scalar_lea.sflag [#allocation13], 1
    %23 = vsyncpa %s22, 0
    %24 = vsyncpa [#allocation16], 0
    %s25 = scalar_lea.sflag [#allocation16], 1
    %26 = vsyncpa %s25, 0
    loop: start=0, step=1, limit=10
    $region2: #{tpu_custom_call.1} parent=1 // loop_pre_header
      _
    $region3: #{tpu_custom_call.1} parent=1 // loop_header
      %s28 = sphi 0, %s32
      %p29 = scmp.ge.s32.totalorder %s28, 10
      %s35 = sphi 0, %s47
      %s36 = sphi 0, %s43
      %s37 = sphi 0, %s35
      %s38 = sphi 0, %s36
      %s39 = sphi 0, %s37
      %s40 = sphi 0, %s38
      %s50 = sphi 0, %s52
      %s53 = sphi 0, %s50
      %s54 = sphi 0, %s53
      %s70 = sphi 0, %s54
      %s74 = sphi 0, %s74
      %s76 = sphi 0, %s74
      %s77 = sphi 0, %s76
      %s91 = sphi 0, %s77
      %s97 = sphi 0, %s99
      %s100 = sphi 0, %s97
      %s101 = sphi 0, %s100
      %s117 = sphi 0, %s101
      %s123 = sphi 0, %s125
      %s126 = sphi 0, %s123
      %s127 = sphi 0, %s126
      %s143 = sphi 0, %s127
      %s149 = sphi 0, %s151
      %s152 = sphi 0, %s149
      %s153 = sphi 0, %s152
      %s169 = sphi 0, %s153
      %s175 = sphi 0, %s177
      %s178 = sphi 0, %s175
      %s179 = sphi 0, %s178
      %s195 = sphi 0, %s179
      %s203 = sphi 0, %s205
      %s206 = sphi 0, %s203
      %s207 = sphi 0, %s206
      %s223 = sphi 0, %s207
      %s229 = sphi 0, %s231
      %s232 = sphi 0, %s229
      %s233 = sphi 0, %s232
      %s249 = sphi 0, %s233
      %s255 = sphi 0, %s257
      %s258 = sphi 0, %s255
      %s259 = sphi 0, %s258
      %s275 = sphi 0, %s259
    $region4: #{tpu_custom_call.1} parent=1 // loop_header_branch
      %31 = sbr.rel (%p29) target = $region8
    $region5: #{tpu_custom_call.1} parent=1 // loop_body
      %s33 = ssub.s32 %s28, 1
      %s34 = ssub.s32 %s28, 2
      %s41 = sadd.s32 1, %s36
      %p42 = scmp.ge.s32.totalorder %s41, 4
      %s43 = scalar_select %p42, 0, %s41
      %s44 = sadd.s32 1, %s35
      %s45 = scalar_select %p42, %s44, %s35
      %p46 = scmp.ge.s32.totalorder %s45, 2
      %s47 = scalar_select %p46, 0, %s45
      %s48 = ssub.s32 %s35, %s47
      %p49 = scmp.eq.s32.totalorder %s48, 0
      %s51 = sadd.s32 %s50, 1
      %s52 = scalar_select %p49, %s50, %s51
      %p55 = pneg %p49
      %p56 = scmp.eq.s32.totalorder %s28, 7
      %p57 = por %p55, %p56
      %p58 = scmp.ne.s32.totalorder %s50, %s53
      %p59 = scmp.eq.s32.totalorder %s28, 0
      %p60 = por %p58, %p59
      %p61 = scmp.ne.s32.totalorder %s50, %s53
      %p62 = scmp.eq.s32.totalorder %s33, 7
      %p63 = por %p61, %p62
      %p64 = scmp.ne.s32.totalorder %s53, %s54
      %p65 = scmp.eq.s32.totalorder %s33, 0
      %p66 = por %p64, %p65
      %p67 = scmp.ne.s32.totalorder %s53, %s54
      %p68 = scmp.eq.s32.totalorder %s34, 7
      %p69 = por %p67, %p68
      %p71 = scmp.ne.s32.totalorder %s54, %s70
      %p72 = scmp.eq.s32.totalorder %s34, 0
      %p73 = por %p71, %p72
      %s75 = sadd.s32 %s74, 1
      %p78 = scmp.eq.s32.totalorder %s28, 7
      %p79 = scmp.ne.s32.totalorder %s74, %s76
      %p80 = scmp.eq.s32.totalorder %s28, 0
      %p81 = por %p79, %p80
      %p82 = scmp.ne.s32.totalorder %s74, %s76
      %p83 = scmp.eq.s32.totalorder %s33, 7
      %p84 = por %p82, %p83
      %p85 = scmp.ne.s32.totalorder %s76, %s77
      %p86 = scmp.eq.s32.totalorder %s33, 0
      %p87 = por %p85, %p86
      %p88 = scmp.ne.s32.totalorder %s76, %s77
      %p89 = scmp.eq.s32.totalorder %s34, 7
      %p90 = por %p88, %p89
      %p92 = scmp.ne.s32.totalorder %s77, %s91
      %p93 = scmp.eq.s32.totalorder %s34, 0
      %p94 = por %p92, %p93
      %s95 = ssub.s32 %s36, %s43
      %p96 = scmp.eq.s32.totalorder %s95, 0
      %s98 = sadd.s32 %s97, 1
      %s99 = scalar_select %p96, %s97, %s98
      %p102 = pneg %p96
      %p103 = scmp.eq.s32.totalorder %s28, 7
      %p104 = por %p102, %p103
      %p105 = scmp.ne.s32.totalorder %s97, %s100
      %p106 = scmp.eq.s32.totalorder %s28, 0
      %p107 = por %p105, %p106
      %p108 = scmp.ne.s32.totalorder %s97, %s100
      %p109 = scmp.eq.s32.totalorder %s33, 7
      %p110 = por %p108, %p109
      %p111 = scmp.ne.s32.totalorder %s100, %s101
      %p112 = scmp.eq.s32.totalorder %s33, 0
      %p113 = por %p111, %p112
      %p114 = scmp.ne.s32.totalorder %s100, %s101
      %p115 = scmp.eq.s32.totalorder %s34, 7
      %p116 = por %p114, %p115
      %p118 = scmp.ne.s32.totalorder %s101, %s117
      %p119 = scmp.eq.s32.totalorder %s34, 0
      %p120 = por %p118, %p119
      %s121 = ssub.s32 %s36, %s43
      %p122 = scmp.eq.s32.totalorder %s121, 0
      %s124 = sadd.s32 %s123, 1
      %s125 = scalar_select %p122, %s123, %s124
      %p128 = pneg %p122
      %p129 = scmp.eq.s32.totalorder %s28, 7
      %p130 = por %p128, %p129
      %p131 = scmp.ne.s32.totalorder %s123, %s126
      %p132 = scmp.eq.s32.totalorder %s28, 0
      %p133 = por %p131, %p132
      %p134 = scmp.ne.s32.totalorder %s123, %s126
      %p135 = scmp.eq.s32.totalorder %s33, 7
      %p136 = por %p134, %p135
      %p137 = scmp.ne.s32.totalorder %s126, %s127
      %p138 = scmp.eq.s32.totalorder %s33, 0
      %p139 = por %p137, %p138
      %p140 = scmp.ne.s32.totalorder %s126, %s127
      %p141 = scmp.eq.s32.totalorder %s34, 7
      %p142 = por %p140, %p141
      %p144 = scmp.ne.s32.totalorder %s127, %s143
      %p145 = scmp.eq.s32.totalorder %s34, 0
      %p146 = por %p144, %p145
      %s147 = ssub.s32 %s36, %s43
      %p148 = scmp.eq.s32.totalorder %s147, 0
      %s150 = sadd.s32 %s149, 1
      %s151 = scalar_select %p148, %s149, %s150
      %p154 = pneg %p148
      %p155 = scmp.eq.s32.totalorder %s28, 7
      %p156 = por %p154, %p155
      %p157 = scmp.ne.s32.totalorder %s149, %s152
      %p158 = scmp.eq.s32.totalorder %s28, 0
      %p159 = por %p157, %p158
      %p160 = scmp.ne.s32.totalorder %s149, %s152
      %p161 = scmp.eq.s32.totalorder %s33, 7
      %p162 = por %p160, %p161
      %p163 = scmp.ne.s32.totalorder %s152, %s153
      %p164 = scmp.eq.s32.totalorder %s33, 0
      %p165 = por %p163, %p164
      %p166 = scmp.ne.s32.totalorder %s152, %s153
      %p167 = scmp.eq.s32.totalorder %s34, 7
      %p168 = por %p166, %p167
      %p170 = scmp.ne.s32.totalorder %s153, %s169
      %p171 = scmp.eq.s32.totalorder %s34, 0
      %p172 = por %p170, %p171
      %s173 = ssub.s32 %s35, %s47
      %p174 = scmp.eq.s32.totalorder %s173, 0
      %s176 = sadd.s32 %s175, 1
      %s177 = scalar_select %p174, %s175, %s176
      %p180 = pneg %p174
      %p181 = scmp.eq.s32.totalorder %s28, 7
      %p182 = por %p180, %p181
      %p183 = scmp.ne.s32.totalorder %s175, %s178
      %p184 = scmp.eq.s32.totalorder %s28, 0
      %p185 = por %p183, %p184
      %p186 = scmp.ne.s32.totalorder %s175, %s178
      %p187 = scmp.eq.s32.totalorder %s33, 7
      %p188 = por %p186, %p187
      %p189 = scmp.ne.s32.totalorder %s178, %s179
      %p190 = scmp.eq.s32.totalorder %s33, 0
      %p191 = por %p189, %p190
      %p192 = scmp.ne.s32.totalorder %s178, %s179
      %p193 = scmp.eq.s32.totalorder %s34, 7
      %p194 = por %p192, %p193
      %p196 = scmp.ne.s32.totalorder %s179, %s195
      %p197 = scmp.eq.s32.totalorder %s34, 0
      %p198 = por %p196, %p197
      %s199 = ssub.s32 %s35, %s47
      %s200 = ssub.s32 %s36, %s43
      %s201 = sor.u32 %s199, %s200
      %p202 = scmp.eq.s32.totalorder %s201, 0
      %s204 = sadd.s32 %s203, 1
      %s205 = scalar_select %p202, %s203, %s204
      %p208 = pneg %p202
      %p209 = scmp.eq.s32.totalorder %s28, 7
      %p210 = por %p208, %p209
      %p211 = scmp.ne.s32.totalorder %s203, %s206
      %p212 = scmp.eq.s32.totalorder %s28, 0
      %p213 = por %p211, %p212
      %p214 = scmp.ne.s32.totalorder %s203, %s206
      %p215 = scmp.eq.s32.totalorder %s33, 7
      %p216 = por %p214, %p215
      %p217 = scmp.ne.s32.totalorder %s206, %s207
      %p218 = scmp.eq.s32.totalorder %s33, 0
      %p219 = por %p217, %p218
      %p220 = scmp.ne.s32.totalorder %s206, %s207
      %p221 = scmp.eq.s32.totalorder %s34, 7
      %p222 = por %p220, %p221
      %p224 = scmp.ne.s32.totalorder %s207, %s223
      %p225 = scmp.eq.s32.totalorder %s34, 0
      %p226 = por %p224, %p225
      %s227 = ssub.s32 %s35, %s47
      %p228 = scmp.eq.s32.totalorder %s227, 0
      %s230 = sadd.s32 %s229, 1
      %s231 = scalar_select %p228, %s229, %s230
      %p234 = pneg %p228
      %p235 = scmp.eq.s32.totalorder %s28, 7
      %p236 = por %p234, %p235
      %p237 = scmp.ne.s32.totalorder %s229, %s232
      %p238 = scmp.eq.s32.totalorder %s28, 0
      %p239 = por %p237, %p238
      %p240 = scmp.ne.s32.totalorder %s229, %s232
      %p241 = scmp.eq.s32.totalorder %s33, 7
      %p242 = por %p240, %p241
      %p243 = scmp.ne.s32.totalorder %s232, %s233
      %p244 = scmp.eq.s32.totalorder %s33, 0
      %p245 = por %p243, %p244
      %p246 = scmp.ne.s32.totalorder %s232, %s233
      %p247 = scmp.eq.s32.totalorder %s34, 7
      %p248 = por %p246, %p247
      %p250 = scmp.ne.s32.totalorder %s233, %s249
      %p251 = scmp.eq.s32.totalorder %s34, 0
      %p252 = por %p250, %p251
      %s253 = ssub.s32 %s35, %s47
      %p254 = scmp.eq.s32.totalorder %s253, 0
      %s256 = sadd.s32 %s255, 1
      %s257 = scalar_select %p254, %s255, %s256
      %p260 = pneg %p254
      %p261 = scmp.eq.s32.totalorder %s28, 7
      %p262 = por %p260, %p261
      %p263 = scmp.ne.s32.totalorder %s255, %s258
      %p264 = scmp.eq.s32.totalorder %s28, 0
      %p265 = por %p263, %p264
      %p266 = scmp.ne.s32.totalorder %s255, %s258
      %p267 = scmp.eq.s32.totalorder %s33, 7
      %p268 = por %p266, %p267
      %p269 = scmp.ne.s32.totalorder %s258, %s259
      %p270 = scmp.eq.s32.totalorder %s33, 0
      %p271 = por %p269, %p270
      %p272 = scmp.ne.s32.totalorder %s258, %s259
      %p273 = scmp.eq.s32.totalorder %s34, 7
      %p274 = por %p272, %p273
      %p276 = scmp.ne.s32.totalorder %s259, %s275
      %p277 = scmp.eq.s32.totalorder %s34, 0
      %p278 = por %p276, %p277
      %p279 = scmp.le.s32.totalorder 1, %s28
      %p280 = scmp.lt.s32.totalorder %s28, 9
      %p281 = pnand %p279, %p280
      %p282 = pneg %p281
      // Predicated region
      $region9: #{tpu_custom_call.1} parent=5 // pred_check
        _
      $region10: #{tpu_custom_call.1} parent=5 // pred_check_branch
        %284 = sbr.rel (%p281) target = $region12
      $region11: #{tpu_custom_call.1} parent=5 // pred_region
        %s285 = ssub.s32 %s28, 1
        // Predicated region
        $region13: #{tpu_custom_call.1} parent=11 // pred_check
          %p286 = pneg %p87
        $region14: #{tpu_custom_call.1} parent=11 // pred_check_branch
          %288 = sbr.rel (%p286) target = $region16
        $region15: #{tpu_custom_call.1} parent=11 // pred_region
          %s290 = ssub.s32 32, 32
          %291 = vsyncadd [#allocation7], %s290
          %s293 = sshll.u32 [#allocation6], 4
          %s294 = int_to_ptr.vmem [resolvable:$true] %s293
          %296 = dma.hbm_to_vmem [thread:$0]  %s1, 32, %s294, [#allocation7]
        $region16: #{tpu_custom_call.1} parent=11 // pred_fallthru
          _
      $region12: #{tpu_custom_call.1} parent=5 // pred_fallthru
        _
      %p297 = scmp.lt.s32.totalorder %s28, 8
      // Predicated region
      $region17: #{tpu_custom_call.1} parent=5 // pred_check
        %p298 = pneg %p297
      $region18: #{tpu_custom_call.1} parent=5 // pred_check_branch
        %300 = sbr.rel (%p298) target = $region20
      $region19: #{tpu_custom_call.1} parent=5 // pred_region
        // Predicated region
        $region21: #{tpu_custom_call.1} parent=19 // pred_check
          %p301 = pneg %p60
        $region22: #{tpu_custom_call.1} parent=19 // pred_check_branch
          %303 = sbr.rel (%p301) target = $region24
        $region23: #{tpu_custom_call.1} parent=19 // pred_region
          %s304 = sand.u32 %s28, 1
          %s305 = scalar_lea.sflag [#allocation4], %s304
          %s306 = sand.u32 %s50, 1
          %s307 = smul.addr %s306, 64
          %s308 = scalar_lea.vmem [#allocation3], %s307
          %s309 = smul.u32 4, %s35
          %s311 = ssub.s32 1024, 1024
          %312 = vsyncadd %s305, %s311
          %s313 = smul.addr %s309, 2
          %s314 = smul.addr %s313, 128
          %s315 = scalar_lea.hbm %s0, %s314
          %s316 = sshll.u32 %s308, 4
          %s317 = int_to_ptr.vmem [resolvable:$true] %s316
          %322 = dma.hbm_to_vmem [thread:$0]  %s315, 1024, %s317, %s305, 256, 256, 16
        $region24: #{tpu_custom_call.1} parent=19 // pred_fallthru
          _
        // Predicated region
        $region25: #{tpu_custom_call.1} parent=19 // pred_check
          %p323 = pneg %p107
        $region26: #{tpu_custom_call.1} parent=19 // pred_check_branch
          %325 = sbr.rel (%p323) target = $region28
        $region27: #{tpu_custom_call.1} parent=19 // pred_region
          %s326 = sand.u32 %s28, 1
          %s327 = scalar_lea.sflag [#allocation4], %s326
          %s328 = sand.u32 %s97, 1
          %s329 = smul.addr %s328, 512
          %s330 = scalar_lea.vmem [#allocation8], %s329
          %s331 = smul.u32 2, %s36
          %s333 = ssub.s32 8192, 8192
          %334 = vsyncadd %s327, %s333
          %s335 = smul.addr %s331, 128
          %s336 = scalar_lea.hbm %s2, %s335
          %s337 = sshll.u32 %s330, 4
          %s338 = int_to_ptr.vmem [resolvable:$true] %s337
          %343 = dma.hbm_to_vmem [thread:$0]  %s336, 8192, %s338, %s327, 1024, 256, 16
        $region28: #{tpu_custom_call.1} parent=19 // pred_fallthru
          _
        // Predicated region
        $region29: #{tpu_custom_call.1} parent=19 // pred_check
          %p344 = pneg %p133
        $region30: #{tpu_custom_call.1} parent=19 // pred_check_branch
          %346 = sbr.rel (%p344) target = $region32
        $region31: #{tpu_custom_call.1} parent=19 // pred_region
          %s347 = sand.u32 %s28, 1
          %s348 = scalar_lea.sflag [#allocation4], %s347
          %s349 = sand.u32 %s123, 1
          %s350 = smul.addr %s349, 2
          %s351 = scalar_lea.vmem [#allocation9], %s350
          %s352 = smul.u32 2, %s36
          %s354 = ssub.s32 32, 32
          %355 = vsyncadd %s348, %s354
          %s356 = smul.addr %s352, 16
          %s357 = scalar_lea.hbm %s3, %s356
          %s359 = sshll.u32 %s351, 4
          %s360 = int_to_ptr.vmem [resolvable:$true] %s359
          %362 = dma.hbm_to_vmem [thread:$0]  %s357, 32, %s360, %s348
        $region32: #{tpu_custom_call.1} parent=19 // pred_fallthru
          _
        // Predicated region
        $region33: #{tpu_custom_call.1} parent=19 // pred_check
          %p363 = pneg %p159
        $region34: #{tpu_custom_call.1} parent=19 // pred_check_branch
          %365 = sbr.rel (%p363) target = $region36
        $region35: #{tpu_custom_call.1} parent=19 // pred_region
          %s366 = sand.u32 %s28, 1
          %s367 = scalar_lea.sflag [#allocation4], %s366
          %s368 = sand.u32 %s149, 1
          %s369 = smul.addr %s368, 512
          %s370 = scalar_lea.vmem [#allocation10], %s369
          %s371 = smul.u32 32, %s36
          %s373 = ssub.s32 8192, 8192
          %374 = vsyncadd %s367, %s373
          %s375 = smul.addr %s371, 2
          %s376 = smul.addr %s375, 128
          %s377 = scalar_lea.hbm %s4, %s376
          %s378 = sshll.u32 %s370, 4
          %s379 = int_to_ptr.vmem [resolvable:$true] %s378
          %384 = dma.hbm_to_vmem [thread:$0]  %s377, 8192, %s379, %s367, 256, 256, 16
        $region36: #{tpu_custom_call.1} parent=19 // pred_fallthru
          _
      $region20: #{tpu_custom_call.1} parent=5 // pred_fallthru
        _
      %p385 = scmp.le.s32.totalorder 1, %s28
      %p386 = scmp.lt.s32.totalorder %s28, 9
      %p387 = pnand %p385, %p386
      %p388 = pneg %p387
      // Predicated region
      $region37: #{tpu_custom_call.1} parent=5 // pred_check
        _
      $region38: #{tpu_custom_call.1} parent=5 // pred_check_branch
        %390 = sbr.rel (%p387) target = $region40
      $region39: #{tpu_custom_call.1} parent=5 // pred_region
        %s391 = ssub.s32 %s28, 1
        %s392 = sand.u32 %s33, 1
        %s393 = scalar_lea.sflag [#allocation4], %s392
        %s394 = sand.u32 %s53, 1
        %s395 = smul.addr %s394, 64
        %s396 = scalar_lea.vmem [#allocation3], %s395
        // Predicated region
        $region41: #{tpu_custom_call.1} parent=39 // pred_check
          %p397 = pneg %p66
        $region42: #{tpu_custom_call.1} parent=39 // pred_check_branch
          %399 = sbr.rel (%p397) target = $region44
        $region43: #{tpu_custom_call.1} parent=39 // pred_region
          %400 = dma.done %s393, 1024
        $region44: #{tpu_custom_call.1} parent=39 // pred_fallthru
          _
        // Predicated region
        $region45: #{tpu_custom_call.1} parent=39 // pred_check
          %p401 = pneg %p87
        $region46: #{tpu_custom_call.1} parent=39 // pred_check_branch
          %403 = sbr.rel (%p401) target = $region48
        $region47: #{tpu_custom_call.1} parent=39 // pred_region
          %404 = dma.done [#allocation7], 32
        $region48: #{tpu_custom_call.1} parent=39 // pred_fallthru
          _
        %s405 = sand.u32 %s33, 1
        %s406 = scalar_lea.sflag [#allocation4], %s405
        %s407 = sand.u32 %s100, 1
        %s408 = smul.addr %s407, 512
        %s409 = scalar_lea.vmem [#allocation8], %s408
        // Predicated region
        $region49: #{tpu_custom_call.1} parent=39 // pred_check
          %p410 = pneg %p113
        $region50: #{tpu_custom_call.1} parent=39 // pred_check_branch
          %412 = sbr.rel (%p410) target = $region52
        $region51: #{tpu_custom_call.1} parent=39 // pred_region
          %413 = dma.done %s406, 8192
        $region52: #{tpu_custom_call.1} parent=39 // pred_fallthru
          _
        %s414 = sand.u32 %s33, 1
        %s415 = scalar_lea.sflag [#allocation4], %s414
        %s416 = sand.u32 %s126, 1
        %s417 = smul.addr %s416, 2
        %s418 = scalar_lea.vmem [#allocation9], %s417
        // Predicated region
        $region53: #{tpu_custom_call.1} parent=39 // pred_check
          %p419 = pneg %p139
        $region54: #{tpu_custom_call.1} parent=39 // pred_check_branch
          %421 = sbr.rel (%p419) target = $region56
        $region55: #{tpu_custom_call.1} parent=39 // pred_region
          %422 = dma.done %s415, 32
        $region56: #{tpu_custom_call.1} parent=39 // pred_fallthru
          _
        %s423 = sand.u32 %s33, 1
        %s424 = scalar_lea.sflag [#allocation4], %s423
        %s425 = sand.u32 %s152, 1
        %s426 = smul.addr %s425, 512
        %s427 = scalar_lea.vmem [#allocation10], %s426
        // Predicated region
        $region57: #{tpu_custom_call.1} parent=39 // pred_check
          %p428 = pneg %p165
        $region58: #{tpu_custom_call.1} parent=39 // pred_check_branch
          %430 = sbr.rel (%p428) target = $region60
        $region59: #{tpu_custom_call.1} parent=39 // pred_region
          %431 = dma.done %s424, 8192
        $region60: #{tpu_custom_call.1} parent=39 // pred_fallthru
          _
        %s432 = sand.u32 %s33, 1
        %s433 = scalar_lea.sflag [#allocation4], %s432
        %s434 = sand.u32 %s53, 1
        %s435 = smul.addr %s434, 64
        %s436 = scalar_lea.vmem [#allocation3], %s435
        %p437 = pneg %p66
        %p438 = pneg %p63
        %p439 = pneg %p87
        %p440 = pneg %p84
        %s441 = sand.u32 %s33, 1
        %s442 = scalar_lea.sflag [#allocation4], %s441
        %s443 = sand.u32 %s100, 1
        %s444 = smul.addr %s443, 512
        %s445 = scalar_lea.vmem [#allocation8], %s444
        %p446 = pneg %p113
        %p447 = pneg %p110
        %s448 = sand.u32 %s33, 1
        %s449 = scalar_lea.sflag [#allocation4], %s448
        %s450 = sand.u32 %s126, 1
        %s451 = smul.addr %s450, 2
        %s452 = scalar_lea.vmem [#allocation9], %s451
        %p453 = pneg %p139
        %p454 = pneg %p136
        %s455 = sand.u32 %s33, 1
        %s456 = scalar_lea.sflag [#allocation4], %s455
        %s457 = sand.u32 %s152, 1
        %s458 = smul.addr %s457, 512
        %s459 = scalar_lea.vmem [#allocation10], %s458
        %p460 = pneg %p165
        %p461 = pneg %p162
        %p462 = pneg %p191
        %p463 = pneg %p188
        %s464 = sand.u32 %s178, 1
        %s465 = scalar_lea.sflag [#allocation5], %s464
        %s466 = sand.u32 %s178, 1
        %s467 = smul.addr %s466, 64
        %s468 = scalar_lea.vmem [#allocation11], %s467
        %p469 = pneg %p219
        %p470 = pneg %p216
        %s471 = sand.u32 %s33, 1
        %s472 = scalar_lea.sflag [#allocation13], %s471
        %s473 = sand.u32 %s206, 1
        %s474 = smul.addr %s473, 64
        %s475 = scalar_lea.vmem [#allocation12], %s474
        %p476 = pneg %p245
        %p477 = pneg %p242
        %s478 = sand.u32 %s33, 1
        %s479 = scalar_lea.sflag [#allocation13], %s478
        %s480 = sand.u32 %s232, 1
        %s481 = smul.addr %s480, 8
        %s482 = scalar_lea.vmem [#allocation14], %s481
        %p483 = pneg %p271
        %p484 = pneg %p268
        %s485 = sand.u32 %s258, 1
        %s486 = scalar_lea.sflag [#allocation16], %s485
        %s487 = sand.u32 %s258, 1
        %s488 = smul.addr %s487, 8
        %s489 = scalar_lea.vmem [#allocation15], %s488
        %s490 = smul.u32 4, %s37
        %s491 = smul.u32 2, %s38
        %s492 = smul.u32 2, %s38
        %s493 = smul.u32 32, %s38
        %s494 = smul.u32 4, %s37
        %s495 = smul.u32 4, %s37
        %s496 = smul.u32 2, %s38
        %p497 = scmp.eq.s32.totalorder %s38, 0
        // Predicated region
        $region61: #{tpu_custom_call.1} parent=39 // pred_check
          %p498 = pneg %p497
        $region62: #{tpu_custom_call.1} parent=39 // pred_check_branch
          %500 = sbr.rel (%p498) target = $region64
        $region63: #{tpu_custom_call.1} parent=39 // pred_region
          %501 = vst [vmem:[%s468] sm:$0xff] 0.0
          %502 = vst [vmem:[%s468 + $0x8] sm:$0xff] 0.0
          %503 = vst [vmem:[%s468 + $0x10] sm:$0xff] 0.0
          %504 = vst [vmem:[%s468 + $0x18] sm:$0xff] 0.0
          %505 = vst [vmem:[%s468 + $0x20] sm:$0xff] 0.0
          %506 = vst [vmem:[%s468 + $0x28] sm:$0xff] 0.0
          %507 = vst [vmem:[%s468 + $0x30] sm:$0xff] 0.0
          %508 = vst [vmem:[%s468 + $0x38] sm:$0xff] 0.0
          %v509 = vlaneseq
          %vm510 = vcmp.ge.s32.totalorder %v509, 0
          %vm511 = vcmp.lt.s32.totalorder %v509, 256
          %vm512 = vmand %vm510, %vm511
          %513 = vst.msk [vmem:[#allocation2] sm:$0x3] %vm512, 0.0
        $region64: #{tpu_custom_call.1} parent=39 // pred_fallthru
          _
        %v514 = vld [vmem:[%s396] sm:$0xff]
        %v515 = vld [vmem:[%s396 + $0x8] sm:$0xff]
        %v516 = vld [vmem:[%s396 + $0x10] sm:$0xff]
        %v517 = vld [vmem:[%s396 + $0x18] sm:$0xff]
        %v518 = vld [vmem:[%s396 + $0x20] sm:$0xff]
        %v519 = vld [vmem:[%s396 + $0x28] sm:$0xff]
        %v520 = vld [vmem:[%s396 + $0x30] sm:$0xff]
        %v521 = vld [vmem:[%s396 + $0x38] sm:$0xff]
        %v522 = vld [vmem:[%s409] sm:$0xff]
        %v523 = vld [vmem:[%s409 + $0x8] sm:$0xff]
        %v524 = vld [vmem:[%s409 + $0x10] sm:$0xff]
        %v525 = vld [vmem:[%s409 + $0x18] sm:$0xff]
        %v526 = vld [vmem:[%s409 + $0x20] sm:$0xff]
        %v527 = vld [vmem:[%s409 + $0x28] sm:$0xff]
        %v528 = vld [vmem:[%s409 + $0x30] sm:$0xff]
        %v529 = vld [vmem:[%s409 + $0x38] sm:$0xff]
        %v530 = vld [vmem:[%s409 + $0x40] sm:$0xff]
        %v531 = vld [vmem:[%s409 + $0x48] sm:$0xff]
        %v532 = vld [vmem:[%s409 + $0x50] sm:$0xff]
        %v533 = vld [vmem:[%s409 + $0x58] sm:$0xff]
        %v534 = vld [vmem:[%s409 + $0x60] sm:$0xff]
        %v535 = vld [vmem:[%s409 + $0x68] sm:$0xff]
        %v536 = vld [vmem:[%s409 + $0x70] sm:$0xff]
        %v537 = vld [vmem:[%s409 + $0x78] sm:$0xff]
        %v538 = vld [vmem:[%s409 + $0x80] sm:$0xff]
        %v539 = vld [vmem:[%s409 + $0x88] sm:$0xff]
        %v540 = vld [vmem:[%s409 + $0x90] sm:$0xff]
        %v541 = vld [vmem:[%s409 + $0x98] sm:$0xff]
        %v542 = vld [vmem:[%s409 + $0xa0] sm:$0xff]
        %v543 = vld [vmem:[%s409 + $0xa8] sm:$0xff]
        %v544 = vld [vmem:[%s409 + $0xb0] sm:$0xff]
        %v545 = vld [vmem:[%s409 + $0xb8] sm:$0xff]
        %v546 = vld [vmem:[%s409 + $0xc0] sm:$0xff]
        %v547 = vld [vmem:[%s409 + $0xc8] sm:$0xff]
        %v548 = vld [vmem:[%s409 + $0xd0] sm:$0xff]
        %v549 = vld [vmem:[%s409 + $0xd8] sm:$0xff]
        %v550 = vld [vmem:[%s409 + $0xe0] sm:$0xff]
        %v551 = vld [vmem:[%s409 + $0xe8] sm:$0xff]
        %v552 = vld [vmem:[%s409 + $0xf0] sm:$0xff]
        %v553 = vld [vmem:[%s409 + $0xf8] sm:$0xff]
        %v554 = vld [vmem:[%s409 + $0x100] sm:$0xff]
        %v555 = vld [vmem:[%s409 + $0x108] sm:$0xff]
        %v556 = vld [vmem:[%s409 + $0x110] sm:$0xff]
        %v557 = vld [vmem:[%s409 + $0x118] sm:$0xff]
        %v558 = vld [vmem:[%s409 + $0x120] sm:$0xff]
        %v559 = vld [vmem:[%s409 + $0x128] sm:$0xff]
        %v560 = vld [vmem:[%s409 + $0x130] sm:$0xff]
        %v561 = vld [vmem:[%s409 + $0x138] sm:$0xff]
        %v562 = vld [vmem:[%s409 + $0x140] sm:$0xff]
        %v563 = vld [vmem:[%s409 + $0x148] sm:$0xff]
        %v564 = vld [vmem:[%s409 + $0x150] sm:$0xff]
        %v565 = vld [vmem:[%s409 + $0x158] sm:$0xff]
        %v566 = vld [vmem:[%s409 + $0x160] sm:$0xff]
        %v567 = vld [vmem:[%s409 + $0x168] sm:$0xff]
        %v568 = vld [vmem:[%s409 + $0x170] sm:$0xff]
        %v569 = vld [vmem:[%s409 + $0x178] sm:$0xff]
        %v570 = vld [vmem:[%s409 + $0x180] sm:$0xff]
        %v571 = vld [vmem:[%s409 + $0x188] sm:$0xff]
        %v572 = vld [vmem:[%s409 + $0x190] sm:$0xff]
        %v573 = vld [vmem:[%s409 + $0x198] sm:$0xff]
        %v574 = vld [vmem:[%s409 + $0x1a0] sm:$0xff]
        %v575 = vld [vmem:[%s409 + $0x1a8] sm:$0xff]
        %v576 = vld [vmem:[%s409 + $0x1b0] sm:$0xff]
        %v577 = vld [vmem:[%s409 + $0x1b8] sm:$0xff]
        %v578 = vld [vmem:[%s409 + $0x1c0] sm:$0xff]
        %v579 = vld [vmem:[%s409 + $0x1c8] sm:$0xff]
        %v580 = vld [vmem:[%s409 + $0x1d0] sm:$0xff]
        %v581 = vld [vmem:[%s409 + $0x1d8] sm:$0xff]
        %v582 = vld [vmem:[%s409 + $0x1e0] sm:$0xff]
        %v583 = vld [vmem:[%s409 + $0x1e8] sm:$0xff]
        %v584 = vld [vmem:[%s409 + $0x1f0] sm:$0xff]
        %v585 = vld [vmem:[%s409 + $0x1f8] sm:$0xff]
        %v586 = vld [vmem:[%s418] sm:$0x3]
        %v588 = vlaneseq
        %v589 = vshrl.u32 %v588, 7
        %v590 = vsub.s32 0, %v589
        %v591 = vrot.slane %v586, %v590
        %v592 = vlaneseq
        %v593 = vshrl.u32 %v592, 7
        %v594 = vsub.s32 1, %v593
        %v595 = vrot.slane %v586, %v594
        %598 = vmatprep.subr.mxu0 %v553
        %599 = vmatpush1.msra.mxu0 %v552
        %600 = vmatprep.subr.mxu0 %v551
        %601 = vmatpush1.msra.mxu0 %v550
        %602 = vmatprep.subr.mxu0 %v549
        %603 = vmatpush1.msra.mxu0 %v548
        %604 = vmatprep.subr.mxu0 %v547
        %605 = vmatpush1.msra.mxu0 %v546
        %606 = vmatprep.subr.mxu0 %v545
        %607 = vmatpush1.msra.mxu0 %v544
        %608 = vmatprep.subr.mxu0 %v543
        %609 = vmatpush1.msra.mxu0 %v542
        %610 = vmatprep.subr.mxu0 %v541
        %611 = vmatpush1.msra.mxu0 %v540
        %612 = vmatprep.subr.mxu0 %v539
        %613 = vmatpush1.msra.mxu0 %v538
        %614 = vmatprep.subr.mxu0 %v537
        %615 = vmatpush1.msra.mxu0 %v536
        %616 = vmatprep.subr.mxu0 %v535
        %617 = vmatpush1.msra.mxu0 %v534
        %618 = vmatprep.subr.mxu0 %v533
        %619 = vmatpush1.msra.mxu0 %v532
        %620 = vmatprep.subr.mxu0 %v531
        %621 = vmatpush1.msra.mxu0 %v530
        %622 = vmatprep.subr.mxu0 %v529
        %623 = vmatpush1.msra.mxu0 %v528
        %624 = vmatprep.subr.mxu0 %v527
        %625 = vmatpush1.msra.mxu0 %v526
        %626 = vmatprep.subr.mxu0 %v525
        %627 = vmatpush1.msra.mxu0 %v524
        %628 = vmatprep.subr.mxu0 %v523
        %629 = vmatpush1.msra.mxu0 %v522
        %630 = vmatprep.subr.mxu0 %v585
        %631 = vmatpush2.msra.mxu0 %v584
        %632 = vmatprep.subr.mxu0 %v583
        %633 = vmatpush2.msra.mxu0 %v582
        %634 = vmatprep.subr.mxu0 %v581
        %635 = vmatpush2.msra.mxu0 %v580
        %636 = vmatprep.subr.mxu0 %v579
        %637 = vmatpush2.msra.mxu0 %v578
        %638 = vmatprep.subr.mxu0 %v577
        %639 = vmatpush2.msra.mxu0 %v576
        %640 = vmatprep.subr.mxu0 %v575
        %641 = vmatpush2.msra.mxu0 %v574
        %642 = vmatprep.subr.mxu0 %v573
        %643 = vmatpush2.msra.mxu0 %v572
        %644 = vmatprep.subr.mxu0 %v571
        %645 = vmatpush2.msra.mxu0 %v570
        %646 = vmatprep.subr.mxu0 %v569
        %647 = vmatpush2.msra.mxu0 %v568
        %648 = vmatprep.subr.mxu0 %v567
        %649 = vmatpush2.msra.mxu0 %v566
        %650 = vmatprep.subr.mxu0 %v565
        %651 = vmatpush2.msra.mxu0 %v564
        %652 = vmatprep.subr.mxu0 %v563
        %653 = vmatpush2.msra.mxu0 %v562
        %654 = vmatprep.subr.mxu0 %v561
        %655 = vmatpush2.msra.mxu0 %v560
        %656 = vmatprep.subr.mxu0 %v559
        %657 = vmatpush2.msra.mxu0 %v558
        %658 = vmatprep.subr.mxu0 %v557
        %659 = vmatpush2.msra.mxu0 %v556
        %660 = vmatprep.subr.mxu0 %v555
        %661 = vmatpush2.msra.mxu0 %v554
        %662 = vmatprep.mubr.f32.mxu0 %v515
        %663 = vmatmul.mubr.f32.gmra.mxu0 %v514
        %v664 = vpop.f32.mrf.mxu0
        %v665 = vadd.f32 %v591, %v664
        %v666 = vpop.f32.mrf.mxu0
        %v667 = vadd.f32 %v595, %v666
        %668 = vmatprep.mubr.f32.mxu0 %v517
        %669 = vmatmul.mubr.f32.gmra.mxu0 %v516
        %v670 = vpop.f32.mrf.mxu0
        %v671 = vadd.f32 %v591, %v670
        %v672 = vpop.f32.mrf.mxu0
        %v673 = vadd.f32 %v595, %v672
        %674 = vmatprep.mubr.f32.mxu0 %v519
        %675 = vmatmul.mubr.f32.gmra.mxu0 %v518
        %v676 = vpop.f32.mrf.mxu0
        %v677 = vadd.f32 %v591, %v676
        %v678 = vpop.f32.mrf.mxu0
        %v679 = vadd.f32 %v595, %v678
        %680 = vmatprep.mubr.f32.mxu0 %v521
        %681 = vmatmul.mubr.f32.gmra.mxu0 %v520
        %v682 = vpop.f32.mrf.mxu0
        %v683 = vadd.f32 %v591, %v682
        %v684 = vpop.f32.mrf.mxu0
        %v685 = vadd.f32 %v595, %v684
        %686 = vdwg.mxu0
        %v687 = vmax.f32 %v665, 0.0
        %v688 = vmax.f32 %v667, 0.0
        %v689 = vmax.f32 %v671, 0.0
        %v690 = vmax.f32 %v673, 0.0
        %v691 = vmax.f32 %v677, 0.0
        %v692 = vmax.f32 %v679, 0.0
        %v693 = vmax.f32 %v683, 0.0
        %v694 = vmax.f32 %v685, 0.0
        %695 = vst [vmem:[%s475] sm:$0xff] %v687
        %696 = vst [vmem:[%s475 + $0x8] sm:$0xff] %v688
        %697 = vst [vmem:[%s475 + $0x10] sm:$0xff] %v689
        %698 = vst [vmem:[%s475 + $0x18] sm:$0xff] %v690
        %699 = vst [vmem:[%s475 + $0x20] sm:$0xff] %v691
        %700 = vst [vmem:[%s475 + $0x28] sm:$0xff] %v692
        %701 = vst [vmem:[%s475 + $0x30] sm:$0xff] %v693
        %702 = vst [vmem:[%s475 + $0x38] sm:$0xff] %v694
        %v703 = vld [vmem:[%s468] sm:$0xff]
        %v704 = vld [vmem:[%s468 + $0x8] sm:$0xff]
        %v705 = vld [vmem:[%s468 + $0x10] sm:$0xff]
        %v706 = vld [vmem:[%s468 + $0x18] sm:$0xff]
        %v707 = vld [vmem:[%s468 + $0x20] sm:$0xff]
        %v708 = vld [vmem:[%s468 + $0x28] sm:$0xff]
        %v709 = vld [vmem:[%s468 + $0x30] sm:$0xff]
        %v710 = vld [vmem:[%s468 + $0x38] sm:$0xff]
        %v711 = vld [vmem:[%s427] sm:$0xff]
        %v712 = vld [vmem:[%s427 + $0x8] sm:$0xff]
        %v713 = vld [vmem:[%s427 + $0x10] sm:$0xff]
        %v714 = vld [vmem:[%s427 + $0x18] sm:$0xff]
        %v715 = vld [vmem:[%s427 + $0x20] sm:$0xff]
        %v716 = vld [vmem:[%s427 + $0x28] sm:$0xff]
        %v717 = vld [vmem:[%s427 + $0x30] sm:$0xff]
        %v718 = vld [vmem:[%s427 + $0x38] sm:$0xff]
        %v719 = vld [vmem:[%s427 + $0x40] sm:$0xff]
        %v720 = vld [vmem:[%s427 + $0x48] sm:$0xff]
        %v721 = vld [vmem:[%s427 + $0x50] sm:$0xff]
        %v722 = vld [vmem:[%s427 + $0x58] sm:$0xff]
        %v723 = vld [vmem:[%s427 + $0x60] sm:$0xff]
        %v724 = vld [vmem:[%s427 + $0x68] sm:$0xff]
        %v725 = vld [vmem:[%s427 + $0x70] sm:$0xff]
        %v726 = vld [vmem:[%s427 + $0x78] sm:$0xff]
        %v727 = vld [vmem:[%s427 + $0x80] sm:$0xff]
        %v728 = vld [vmem:[%s427 + $0x88] sm:$0xff]
        %v729 = vld [vmem:[%s427 + $0x90] sm:$0xff]
        %v730 = vld [vmem:[%s427 + $0x98] sm:$0xff]
        %v731 = vld [vmem:[%s427 + $0xa0] sm:$0xff]
        %v732 = vld [vmem:[%s427 + $0xa8] sm:$0xff]
        %v733 = vld [vmem:[%s427 + $0xb0] sm:$0xff]
        %v734 = vld [vmem:[%s427 + $0xb8] sm:$0xff]
        %v735 = vld [vmem:[%s427 + $0xc0] sm:$0xff]
        %v736 = vld [vmem:[%s427 + $0xc8] sm:$0xff]
        %v737 = vld [vmem:[%s427 + $0xd0] sm:$0xff]
        %v738 = vld [vmem:[%s427 + $0xd8] sm:$0xff]
        %v739 = vld [vmem:[%s427 + $0xe0] sm:$0xff]
        %v740 = vld [vmem:[%s427 + $0xe8] sm:$0xff]
        %v741 = vld [vmem:[%s427 + $0xf0] sm:$0xff]
        %v742 = vld [vmem:[%s427 + $0xf8] sm:$0xff]
        %v743 = vld [vmem:[%s427 + $0x100] sm:$0xff]
        %v744 = vld [vmem:[%s427 + $0x108] sm:$0xff]
        %v745 = vld [vmem:[%s427 + $0x110] sm:$0xff]
        %v746 = vld [vmem:[%s427 + $0x118] sm:$0xff]
        %v747 = vld [vmem:[%s427 + $0x120] sm:$0xff]
        %v748 = vld [vmem:[%s427 + $0x128] sm:$0xff]
        %v749 = vld [vmem:[%s427 + $0x130] sm:$0xff]
        %v750 = vld [vmem:[%s427 + $0x138] sm:$0xff]
        %v751 = vld [vmem:[%s427 + $0x140] sm:$0xff]
        %v752 = vld [vmem:[%s427 + $0x148] sm:$0xff]
        %v753 = vld [vmem:[%s427 + $0x150] sm:$0xff]
        %v754 = vld [vmem:[%s427 + $0x158] sm:$0xff]
        %v755 = vld [vmem:[%s427 + $0x160] sm:$0xff]
        %v756 = vld [vmem:[%s427 + $0x168] sm:$0xff]
        %v757 = vld [vmem:[%s427 + $0x170] sm:$0xff]
        %v758 = vld [vmem:[%s427 + $0x178] sm:$0xff]
        %v759 = vld [vmem:[%s427 + $0x180] sm:$0xff]
        %v760 = vld [vmem:[%s427 + $0x188] sm:$0xff]
        %v761 = vld [vmem:[%s427 + $0x190] sm:$0xff]
        %v762 = vld [vmem:[%s427 + $0x198] sm:$0xff]
        %v763 = vld [vmem:[%s427 + $0x1a0] sm:$0xff]
        %v764 = vld [vmem:[%s427 + $0x1a8] sm:$0xff]
        %v765 = vld [vmem:[%s427 + $0x1b0] sm:$0xff]
        %v766 = vld [vmem:[%s427 + $0x1b8] sm:$0xff]
        %v767 = vld [vmem:[%s427 + $0x1c0] sm:$0xff]
        %v768 = vld [vmem:[%s427 + $0x1c8] sm:$0xff]
        %v769 = vld [vmem:[%s427 + $0x1d0] sm:$0xff]
        %v770 = vld [vmem:[%s427 + $0x1d8] sm:$0xff]
        %v771 = vld [vmem:[%s427 + $0x1e0] sm:$0xff]
        %v772 = vld [vmem:[%s427 + $0x1e8] sm:$0xff]
        %v773 = vld [vmem:[%s427 + $0x1f0] sm:$0xff]
        %v774 = vld [vmem:[%s427 + $0x1f8] sm:$0xff]
        %775 = vmatprep.subr.mxu0 %v742
        %776 = vmatpush1.msra.mxu0 %v741
        %777 = vmatprep.subr.mxu0 %v740
        %778 = vmatpush1.msra.mxu0 %v739
        %779 = vmatprep.subr.mxu0 %v738
        %780 = vmatpush1.msra.mxu0 %v737
        %781 = vmatprep.subr.mxu0 %v736
        %782 = vmatpush1.msra.mxu0 %v735
        %783 = vmatprep.subr.mxu0 %v734
        %784 = vmatpush1.msra.mxu0 %v733
        %785 = vmatprep.subr.mxu0 %v732
        %786 = vmatpush1.msra.mxu0 %v731
        %787 = vmatprep.subr.mxu0 %v730
        %788 = vmatpush1.msra.mxu0 %v729
        %789 = vmatprep.subr.mxu0 %v728
        %790 = vmatpush1.msra.mxu0 %v727
        %791 = vmatprep.subr.mxu0 %v726
        %792 = vmatpush1.msra.mxu0 %v725
        %793 = vmatprep.subr.mxu0 %v724
        %794 = vmatpush1.msra.mxu0 %v723
        %795 = vmatprep.subr.mxu0 %v722
        %796 = vmatpush1.msra.mxu0 %v721
        %797 = vmatprep.subr.mxu0 %v720
        %798 = vmatpush1.msra.mxu0 %v719
        %799 = vmatprep.subr.mxu0 %v718
        %800 = vmatpush1.msra.mxu0 %v717
        %801 = vmatprep.subr.mxu0 %v716
        %802 = vmatpush1.msra.mxu0 %v715
        %803 = vmatprep.subr.mxu0 %v714
        %804 = vmatpush1.msra.mxu0 %v713
        %805 = vmatprep.subr.mxu0 %v712
        %806 = vmatpush1.msra.mxu0 %v711
        %807 = vmatprep.subr.mxu0 %v774
        %808 = vmatpush2.msra.mxu0 %v773
        %809 = vmatprep.subr.mxu0 %v772
        %810 = vmatpush2.msra.mxu0 %v771
        %811 = vmatprep.subr.mxu0 %v770
        %812 = vmatpush2.msra.mxu0 %v769
        %813 = vmatprep.subr.mxu0 %v768
        %814 = vmatpush2.msra.mxu0 %v767
        %815 = vmatprep.subr.mxu0 %v766
        %816 = vmatpush2.msra.mxu0 %v765
        %817 = vmatprep.subr.mxu0 %v764
        %818 = vmatpush2.msra.mxu0 %v763
        %819 = vmatprep.subr.mxu0 %v762
        %820 = vmatpush2.msra.mxu0 %v761
        %821 = vmatprep.subr.mxu0 %v760
        %822 = vmatpush2.msra.mxu0 %v759
        %823 = vmatprep.subr.mxu0 %v758
        %824 = vmatpush2.msra.mxu0 %v757
        %825 = vmatprep.subr.mxu0 %v756
        %826 = vmatpush2.msra.mxu0 %v755
        %827 = vmatprep.subr.mxu0 %v754
        %828 = vmatpush2.msra.mxu0 %v753
        %829 = vmatprep.subr.mxu0 %v752
        %830 = vmatpush2.msra.mxu0 %v751
        %831 = vmatprep.subr.mxu0 %v750
        %832 = vmatpush2.msra.mxu0 %v749
        %833 = vmatprep.subr.mxu0 %v748
        %834 = vmatpush2.msra.mxu0 %v747
        %835 = vmatprep.subr.mxu0 %v746
        %836 = vmatpush2.msra.mxu0 %v745
        %837 = vmatprep.subr.mxu0 %v744
        %838 = vmatpush2.msra.mxu0 %v743
        %839 = vmatprep.mubr.f32.mxu0 %v688
        %840 = vmatmul.mubr.f32.gmra.mxu0 %v687
        %v841 = vpop.f32.mrf.mxu0
        %v842 = vadd.f32 0.0, %v841
        %v843 = vpop.f32.mrf.mxu0
        %v844 = vadd.f32 0.0, %v843
        %845 = vmatprep.mubr.f32.mxu0 %v690
        %846 = vmatmul.mubr.f32.gmra.mxu0 %v689
        %v847 = vpop.f32.mrf.mxu0
        %v848 = vadd.f32 0.0, %v847
        %v849 = vpop.f32.mrf.mxu0
        %v850 = vadd.f32 0.0, %v849
        %851 = vmatprep.mubr.f32.mxu0 %v692
        %852 = vmatmul.mubr.f32.gmra.mxu0 %v691
        %v853 = vpop.f32.mrf.mxu0
        %v854 = vadd.f32 0.0, %v853
        %v855 = vpop.f32.mrf.mxu0
        %v856 = vadd.f32 0.0, %v855
        %857 = vmatprep.mubr.f32.mxu0 %v694
        %858 = vmatmul.mubr.f32.gmra.mxu0 %v693
        %v859 = vpop.f32.mrf.mxu0
        %v860 = vadd.f32 0.0, %v859
        %v861 = vpop.f32.mrf.mxu0
        %v862 = vadd.f32 0.0, %v861
        %863 = vdwg.mxu0
        %v864 = vadd.f32 %v703, %v842
        %v865 = vadd.f32 %v704, %v844
        %v866 = vadd.f32 %v705, %v848
        %v867 = vadd.f32 %v706, %v850
        %v868 = vadd.f32 %v707, %v854
        %v869 = vadd.f32 %v708, %v856
        %v870 = vadd.f32 %v709, %v860
        %v871 = vadd.f32 %v710, %v862
        %872 = vst [vmem:[%s468] sm:$0xff] %v864
        %873 = vst [vmem:[%s468 + $0x8] sm:$0xff] %v865
        %874 = vst [vmem:[%s468 + $0x10] sm:$0xff] %v866
        %875 = vst [vmem:[%s468 + $0x18] sm:$0xff] %v867
        %876 = vst [vmem:[%s468 + $0x20] sm:$0xff] %v868
        %877 = vst [vmem:[%s468 + $0x28] sm:$0xff] %v869
        %878 = vst [vmem:[%s468 + $0x30] sm:$0xff] %v870
        %879 = vst [vmem:[%s468 + $0x38] sm:$0xff] %v871
        %v880 = vld [vmem:[#allocation2] sm:$0x3]
        %v881 = vadd.f32 %v687, %v689
        %v882 = vadd.f32 %v881, %v691
        %v883 = vadd.f32 %v882, %v693
        %v884 = vrot.slane %v883, 4
        %v885 = vadd.f32 %v883, %v884
        %v886 = vrot.slane %v885, 2
        %v887 = vadd.f32 %v885, %v886
        %v888 = vrot.slane %v887, 1
        %v889 = vadd.f32 %v887, %v888
        %v890 = vadd.f32 %v688, %v690
        %v891 = vadd.f32 %v890, %v692
        %v892 = vadd.f32 %v891, %v694
        %v893 = vrot.slane %v892, 4
        %v894 = vadd.f32 %v892, %v893
        %v895 = vrot.slane %v894, 2
        %v896 = vadd.f32 %v894, %v895
        %v897 = vrot.slane %v896, 1
        %v898 = vadd.f32 %v896, %v897
        %v901 = vcombine.low %v889, %v898
        %v903 = vunpack.c.l.s4 1966171168
        %v904 = vunpack.c.0.s8 %v903
        %v905 = vlaneseq
        %v906 = vshrl.u32 %v905, 7
        %v907 = vsub.s32 %v904, %v906
        %v908 = vrot.slane %v901, %v907
        %v910 = vunpack.c.l.s4 1966171168
        %v911 = vunpack.c.0.s8 %v910
        %v912 = vlaneseq
        %v913 = vshrl.u32 %v912, 7
        %v914 = vsub.s32 %v911, %v913
        %v915 = vrot.slane %v908, %v914
        %v917 = vadd.f32 %v880, %v915
        %v918 = vlaneseq
        %vm919 = vcmp.ge.s32.totalorder %v918, 0
        %vm920 = vcmp.lt.s32.totalorder %v918, 256
        %vm921 = vmand %vm919, %vm920
        %922 = vst.msk [vmem:[#allocation2] sm:$0x3] %vm921, %v917
        %p923 = scmp.eq.s32.totalorder %s38, 3
        // Predicated region
        $region65: #{tpu_custom_call.1} parent=39 // pred_check
          %p924 = pneg %p923
        $region66: #{tpu_custom_call.1} parent=39 // pred_check_branch
          %926 = sbr.rel (%p924) target = $region68
        $region67: #{tpu_custom_call.1} parent=39 // pred_region
          %v927 = vld [vmem:[%s468] sm:$0xff]
          %v928 = vld [vmem:[%s468 + $0x8] sm:$0xff]
          %v929 = vld [vmem:[%s468 + $0x10] sm:$0xff]
          %v930 = vld [vmem:[%s468 + $0x18] sm:$0xff]
          %v931 = vld [vmem:[%s468 + $0x20] sm:$0xff]
          %v932 = vld [vmem:[%s468 + $0x28] sm:$0xff]
          %v933 = vld [vmem:[%s468 + $0x30] sm:$0xff]
          %v934 = vld [vmem:[%s468 + $0x38] sm:$0xff]
          %v935 = vld [vmem:[#allocation6] sm:$0x3]
          %v937 = vlaneseq
          %v938 = vshrl.u32 %v937, 7
          %v939 = vsub.s32 0, %v938
          %v940 = vrot.slane %v935, %v939
          %v941 = vlaneseq
          %v942 = vshrl.u32 %v941, 7
          %v943 = vsub.s32 1, %v942
          %v944 = vrot.slane %v935, %v943
          %v947 = vadd.f32 %v927, %v940
          %v948 = vadd.f32 %v928, %v944
          %v949 = vadd.f32 %v929, %v940
          %v950 = vadd.f32 %v930, %v944
          %v951 = vadd.f32 %v931, %v940
          %v952 = vadd.f32 %v932, %v944
          %v953 = vadd.f32 %v933, %v940
          %v954 = vadd.f32 %v934, %v944
          %955 = vst [vmem:[%s468] sm:$0xff] %v947
          %956 = vst [vmem:[%s468 + $0x8] sm:$0xff] %v948
          %957 = vst [vmem:[%s468 + $0x10] sm:$0xff] %v949
          %958 = vst [vmem:[%s468 + $0x18] sm:$0xff] %v950
          %959 = vst [vmem:[%s468 + $0x20] sm:$0xff] %v951
          %960 = vst [vmem:[%s468 + $0x28] sm:$0xff] %v952
          %961 = vst [vmem:[%s468 + $0x30] sm:$0xff] %v953
          %962 = vst [vmem:[%s468 + $0x38] sm:$0xff] %v954
          %v963 = vld [vmem:[%s396] sm:$0xff]
          %v964 = vld [vmem:[%s396 + $0x8] sm:$0xff]
          %v965 = vld [vmem:[%s396 + $0x10] sm:$0xff]
          %v966 = vld [vmem:[%s396 + $0x18] sm:$0xff]
          %v967 = vld [vmem:[%s396 + $0x20] sm:$0xff]
          %v968 = vld [vmem:[%s396 + $0x28] sm:$0xff]
          %v969 = vld [vmem:[%s396 + $0x30] sm:$0xff]
          %v970 = vld [vmem:[%s396 + $0x38] sm:$0xff]
          %v971 = vsub.f32 %v947, %v963
          %v972 = vsub.f32 %v948, %v964
          %v973 = vsub.f32 %v949, %v965
          %v974 = vsub.f32 %v950, %v966
          %v975 = vsub.f32 %v951, %v967
          %v976 = vsub.f32 %v952, %v968
          %v977 = vsub.f32 %v953, %v969
          %v978 = vsub.f32 %v954, %v970
          %v979 = vmul.f32 %v971, %v971
          %v980 = vmul.f32 %v972, %v972
          %v981 = vmul.f32 %v973, %v973
          %v982 = vmul.f32 %v974, %v974
          %v983 = vmul.f32 %v975, %v975
          %v984 = vmul.f32 %v976, %v976
          %v985 = vmul.f32 %v977, %v977
          %v986 = vmul.f32 %v978, %v978
          %v987 = vadd.f32 %v979, %v980
          %v988 = vadd.f32 %v987, %v981
          %v989 = vadd.f32 %v988, %v982
          %v990 = vadd.f32 %v989, %v983
          %v991 = vadd.f32 %v990, %v984
          %v992 = vadd.f32 %v991, %v985
          %v993 = vadd.f32 %v992, %v986
          %994 = vadd.xlane.f32.xlu0 %v993
          %v995 = vpop.xlane.xlu0 %994
          %v996 = vrot.slane %v995, 4
          %v997 = vadd.f32 %v995, %v996
          %v998 = vrot.slane %v997, 2
          %v999 = vadd.f32 %v997, %v998
          %v1000 = vrot.slane %v999, 1
          %v1001 = vadd.f32 %v999, %v1000
          %s1002 = vtos %v1001
          %v1003 = vld [vmem:[#allocation2] sm:$0x3]
          %v1005 = vlaneseq
          %v1006 = vshrl.u32 %v1005, 7
          %v1007 = vsub.s32 0, %v1006
          %v1008 = vrot.slane %v1003, %v1007
          %v1009 = vlaneseq
          %v1010 = vshrl.u32 %v1009, 7
          %v1011 = vsub.s32 1, %v1010
          %v1012 = vrot.slane %v1003, %v1011
          %vm1015 = vcmask 1040384
          %v1016 = vsel %vm1015, %v1008, 0.0
          %v1017 = vsel %vm1015, %v1012, 0.0
          %v1018 = vadd.f32 %v1016, %v1017
          %1019 = vadd.xlane.f32.xlu0 %v1018
          %v1020 = vpop.xlane.xlu0 %1019
          %v1021 = vrot.slane %v1020, 4
          %v1022 = vadd.f32 %v1020, %v1021
          %v1023 = vrot.slane %v1022, 2
          %v1024 = vadd.f32 %v1022, %v1023
          %v1025 = vrot.slane %v1024, 1
          %v1026 = vadd.f32 %v1024, %v1025
          %s1027 = vtos %v1026
          %v1028 = vlaneseq
          %v1029 = vshrl.u32 %v1028, 7
          %v1030 = vlaneseq
          %v1031 = vand.u32 %v1030, 127
          %vm1032 = vcmp.eq.s32.totalorder %v1029, 0
          %vm1033 = vcmp.eq.s32.totalorder %v1031, 0
          %vm1034 = vmand %vm1032, %vm1033
          %v1035 = vstv %s1002
          %v1036 = vsel %vm1034, %v1035, 0.0
          %1037 = vst [vmem:[%s482] sm:$0xff] %v1036
          %v1038 = vstv %s1027
          %v1039 = vsel %vm1034, %v1038, 0.0
          %1040 = vst [vmem:[%s489] sm:$0xff] %v1039
        $region68: #{tpu_custom_call.1} parent=39 // pred_fallthru
          _
        %s1041 = sand.u32 %s178, 1
        %s1042 = scalar_lea.sflag [#allocation5], %s1041
        %s1043 = sand.u32 %s178, 1
        %s1044 = smul.addr %s1043, 64
        %s1045 = scalar_lea.vmem [#allocation11], %s1044
        %s1046 = sand.u32 %s33, 1
        %s1047 = scalar_lea.sflag [#allocation13], %s1046
        %s1048 = sand.u32 %s206, 1
        %s1049 = smul.addr %s1048, 64
        %s1050 = scalar_lea.vmem [#allocation12], %s1049
        %s1051 = sand.u32 %s33, 1
        %s1052 = scalar_lea.sflag [#allocation13], %s1051
        %s1053 = sand.u32 %s232, 1
        %s1054 = smul.addr %s1053, 8
        %s1055 = scalar_lea.vmem [#allocation14], %s1054
        %s1056 = sand.u32 %s258, 1
        %s1057 = scalar_lea.sflag [#allocation16], %s1056
        %s1058 = sand.u32 %s258, 1
        %s1059 = smul.addr %s1058, 8
        %s1060 = scalar_lea.vmem [#allocation15], %s1059
        // Predicated region
        $region69: #{tpu_custom_call.1} parent=39 // pred_check
          %p1061 = pneg %p188
        $region70: #{tpu_custom_call.1} parent=39 // pred_check_branch
          %1063 = sbr.rel (%p1061) target = $region72
        $region71: #{tpu_custom_call.1} parent=39 // pred_region
          %s1064 = smul.u32 4, %s37
          %s1066 = ssub.s32 1024, 1024
          %1067 = vsyncadd %s1042, %s1066
          %s1068 = smul.addr %s1064, 2
          %s1069 = smul.addr %s1068, 128
          %s1070 = scalar_lea.hbm %s5, %s1069
          %s1071 = sshll.u32 %s1045, 4
          %s1072 = int_to_ptr.vmem [resolvable:$true] %s1071
          %1077 = dma.vmem_to_hbm [thread:$0]  %s1072, 1024, %s1070, %s1042, 256, 256, 16
        $region72: #{tpu_custom_call.1} parent=39 // pred_fallthru
          _
        // Predicated region
        $region73: #{tpu_custom_call.1} parent=39 // pred_check
          %p1078 = pneg %p216
        $region74: #{tpu_custom_call.1} parent=39 // pred_check_branch
          %1080 = sbr.rel (%p1078) target = $region76
        $region75: #{tpu_custom_call.1} parent=39 // pred_region
          %s1081 = smul.u32 4, %s37
          %s1082 = smul.u32 2, %s38
          %s1084 = ssub.s32 1024, 1024
          %1085 = vsyncadd %s1047, %s1084
          %s1086 = smul.addr %s1081, 8
          %s1087 = sadd.s32 %s1082, %s1086
          %s1088 = smul.addr %s1087, 128
          %s1089 = scalar_lea.hbm %s6, %s1088
          %s1090 = sshll.u32 %s1050, 4
          %s1091 = int_to_ptr.vmem [resolvable:$true] %s1090
          %1096 = dma.vmem_to_hbm [thread:$0]  %s1091, 1024, %s1089, %s1047, 256, 1024, 16
        $region76: #{tpu_custom_call.1} parent=39 // pred_fallthru
          _
        // Predicated region
        $region77: #{tpu_custom_call.1} parent=39 // pred_check
          %p1097 = pneg %p242
        $region78: #{tpu_custom_call.1} parent=39 // pred_check_branch
          %1099 = sbr.rel (%p1097) target = $region80
        $region79: #{tpu_custom_call.1} parent=39 // pred_region
          %s1101 = ssub.s32 128, 128
          %1102 = vsyncadd %s1052, %s1101
          %s1103 = smul.addr %s37, 128
          %s1104 = scalar_lea.hbm %s7, %s1103
          %s1106 = sshll.u32 %s1055, 4
          %s1107 = int_to_ptr.vmem [resolvable:$true] %s1106
          %1109 = dma.vmem_to_hbm [thread:$0]  %s1107, 128, %s1104, %s1052
        $region80: #{tpu_custom_call.1} parent=39 // pred_fallthru
          _
        // Predicated region
        $region81: #{tpu_custom_call.1} parent=39 // pred_check
          %p1110 = pneg %p268
        $region82: #{tpu_custom_call.1} parent=39 // pred_check_branch
          %1112 = sbr.rel (%p1110) target = $region84
        $region83: #{tpu_custom_call.1} parent=39 // pred_region
          %s1114 = ssub.s32 128, 128
          %1115 = vsyncadd %s1057, %s1114
          %s1116 = smul.addr %s37, 128
          %s1117 = scalar_lea.hbm %s8, %s1116
          %s1119 = sshll.u32 %s1060, 4
          %s1120 = int_to_ptr.vmem [resolvable:$true] %s1119
          %1122 = dma.vmem_to_hbm [thread:$0]  %s1120, 128, %s1117, %s1057
        $region84: #{tpu_custom_call.1} parent=39 // pred_fallthru
          _
      $region40: #{tpu_custom_call.1} parent=5 // pred_fallthru
        _
      %p1123 = scmp.le.s32.totalorder 2, %s28
      // Predicated region
      $region85: #{tpu_custom_call.1} parent=5 // pred_check
        %p1124 = pneg %p1123
      $region86: #{tpu_custom_call.1} parent=5 // pred_check_branch
        %1126 = sbr.rel (%p1124) target = $region88
      $region87: #{tpu_custom_call.1} parent=5 // pred_region
        %s1127 = ssub.s32 %s28, 2
        // Predicated region
        $region89: #{tpu_custom_call.1} parent=87 // pred_check
          %p1128 = pneg %p194
        $region90: #{tpu_custom_call.1} parent=87 // pred_check_branch
          %1130 = sbr.rel (%p1128) target = $region92
        $region91: #{tpu_custom_call.1} parent=87 // pred_region
          %s1131 = sand.u32 %s179, 1
          %s1132 = scalar_lea.sflag [#allocation5], %s1131
          %s1133 = sand.u32 %s179, 1
          %s1134 = smul.addr %s1133, 64
          %s1135 = scalar_lea.vmem [#allocation11], %s1134
          %1136 = dma.done %s1132, 1024
        $region92: #{tpu_custom_call.1} parent=87 // pred_fallthru
          _
        // Predicated region
        $region93: #{tpu_custom_call.1} parent=87 // pred_check
          %p1137 = pneg %p222
        $region94: #{tpu_custom_call.1} parent=87 // pred_check_branch
          %1139 = sbr.rel (%p1137) target = $region96
        $region95: #{tpu_custom_call.1} parent=87 // pred_region
          %s1140 = sand.u32 %s34, 1
          %s1141 = scalar_lea.sflag [#allocation13], %s1140
          %s1142 = sand.u32 %s207, 1
          %s1143 = smul.addr %s1142, 64
          %s1144 = scalar_lea.vmem [#allocation12], %s1143
          %1145 = dma.done %s1141, 1024
        $region96: #{tpu_custom_call.1} parent=87 // pred_fallthru
          _
        // Predicated region
        $region97: #{tpu_custom_call.1} parent=87 // pred_check
          %p1146 = pneg %p248
        $region98: #{tpu_custom_call.1} parent=87 // pred_check_branch
          %1148 = sbr.rel (%p1146) target = $region100
        $region99: #{tpu_custom_call.1} parent=87 // pred_region
          %s1149 = sand.u32 %s34, 1
          %s1150 = scalar_lea.sflag [#allocation13], %s1149
          %s1151 = sand.u32 %s233, 1
          %s1152 = smul.addr %s1151, 8
          %s1153 = scalar_lea.vmem [#allocation14], %s1152
          %1154 = dma.done %s1150, 128
        $region100: #{tpu_custom_call.1} parent=87 // pred_fallthru
          _
        // Predicated region
        $region101: #{tpu_custom_call.1} parent=87 // pred_check
          %p1155 = pneg %p274
        $region102: #{tpu_custom_call.1} parent=87 // pred_check_branch
          %1157 = sbr.rel (%p1155) target = $region104
        $region103: #{tpu_custom_call.1} parent=87 // pred_region
          %s1158 = sand.u32 %s259, 1
          %s1159 = scalar_lea.sflag [#allocation16], %s1158
          %s1160 = sand.u32 %s259, 1
          %s1161 = smul.addr %s1160, 8
          %s1162 = scalar_lea.vmem [#allocation15], %s1161
          %1163 = dma.done %s1159, 128
        $region104: #{tpu_custom_call.1} parent=87 // pred_fallthru
          _
      $region88: #{tpu_custom_call.1} parent=5 // pred_fallthru
        _
    $region6: #{tpu_custom_call.1} parent=1 // loop_footer
      %s32 = sadd.s32 1, %s28
    $region7: #{tpu_custom_call.1} parent=1 // loop_footer_branch
      %27 = sbr.rel target = $region3
    $region8: #{tpu_custom_call.1} parent=1 // loop_exit
      _
    %1164 = vsyncpa [#allocation4], 1
    %s1165 = scalar_lea.sflag [#allocation4], 1
    %1166 = vsyncpa %s1165, 1
    %1167 = vsyncpa [#allocation7], 1
    %1168 = vsyncpa [#allocation5], 1
    %s1169 = scalar_lea.sflag [#allocation5], 1
    %1170 = vsyncpa %s1169, 1
    %1171 = vsyncpa [#allocation13], 1
    %s1172 = scalar_lea.sflag [#allocation13], 1
    %1173 = vsyncpa %s1172, 1
    %1174 = vsyncpa [#allocation16], 1
    %s1175 = scalar_lea.sflag [#allocation16], 1
    %1176 = vsyncpa %s1175, 1

</llo_original>
